<compile_context>
chip_gen: v7x
topology: tpu7x:2x2x1
jax: 0.10.0
libtpu: 0.0.40
codegen_flags: <defaults>
</compile_context>

<pallas_src>
import numpy as np
import jax
import jax.numpy as jnp
from jax.experimental import pallas as pl
from jax.experimental.pallas import tpu as pltpu

# ------------------ configuration (mirrors CapsuleCONV.__init__) ------------------
IN_N_CAPS = 4        # n
IN_D_CAPS = 16       # a
OUT_N_CAPS = 8       # m
OUT_D_CAPS = 16      # d
KERNEL = (3, 3)      # (k, l)
STRIDE = 2
DROPOUT = 0.0        # nn.Dropout(dp) -> identity here
LN_EPS = 1e-5        # nn.LayerNorm default eps
SCALE = 1.0 / OUT_D_CAPS ** 0.5

NKL = IN_N_CAPS * KERNEL[0] * KERNEL[1]            # 36 patch/capsule entries "c"
MD = OUT_N_CAPS * OUT_D_CAPS                       # 128  (lane-dense output width)
C_CHUNK = 128 // IN_D_CAPS                         # 8 c-entries per 128-lane chunk
N_CHUNKS = pl.cdiv(NKL, C_CHUNK)                   # 5 resident weight blocks
NKL_PAD = N_CHUNKS * C_CHUNK                       # 40 (zero-padded c axis)
XW = NKL_PAD * IN_D_CAPS                           # 640 input lanes (576 -> 640)
TP_CAP = 512                                       # position-tile cap (all gens)
QK_NORM = 1.0 / (1.0 + 1e-10)                      # torch's qk / (sum_m qk + 1e-10)


def _round_up(x, m):
    return (x + m - 1) // m * m


# ------------------------------- Pallas kernels -----------------------------------
def _seg_layernorm(y, pseg, gamma, beta):
    """nn.LayerNorm over each D=16 segment of the lane-dense (rows, M*D=128) layout.

    pseg is the constant 0/1 block matrix that sums over d inside every m segment
    and broadcasts the result back over the segment, so the reduction rides the
    MXU and the data stays 128-lane dense.  Operands stay f32 (exact 0/1 matrix;
    this matched the f32 reference in the previously validated version).
    """
    inv_d = 1.0 / OUT_D_CAPS
    mu = jnp.dot(y, pseg, preferred_element_type=jnp.float32) * inv_d
    cen = y - mu
    var = jnp.dot(cen * cen, pseg, preferred_element_type=jnp.float32) * inv_d
    return cen * jax.lax.rsqrt(var + LN_EPS) * gamma + beta


def first_pass_kernel(x_ref, w_ref, pseg_ref, g_ref, b_ref, o_ref):
    """next_capsule_value is None branch.

    query_key = softmax(zeros) = 1/M (uniform), so the triple einsum collapses to
      out[p, (m,d)] = sum_c x[p, c] * (w[c, (m,d)] / M)     c = (n,k,l,a)
    (1/M is baked into w in the wrapper) followed by LayerNorm over d.
    One (TP, 640) x (640, 128) bf16 matmul + segmented LN.
    """
    y = jnp.dot(x_ref[...], w_ref[...], preferred_element_type=jnp.float32)
    o_ref[...] = _seg_layernorm(y, pseg_ref[...], g_ref[...], b_ref[...])


def routing_kernel(x_ref, w_ref, v_ref, pseg_ref, g_ref, b_ref, o_ref):
    """Dot-product attention routing branch (next_capsule_value given).

    Grid = (position tiles,) only ["parallel"].  Per tile, loop over the 5
    resident block-diagonal weight blocks:
      u[p, (c,m,d)] = x_chunk(TP,128) @ Wblk(128,1024)        (bf16 MXU)
      logit[p, m]   = sum_d u[p,c,m,d] * (SCALE*v[p,m,d])      (bf16 segment matmul)
      qk            = softmax_m(logit) * 1/(1+1e-10)           (recip-mult, no divide)
      acc          += qk * u_c                                  (f32, local)
    Padded c entries (36..39) are skipped.  Segmented LayerNorm is applied once
    and the output tile is written exactly once (no cross-step revisits).
    """
    x = x_ref[...]                       # (TP, 640) bf16
    v = v_ref[...]                       # (TP, 128) f32, pre-scaled by SCALE
    pseg = pseg_ref[...]                 # (128, 128) f32, 0/1 block-diagonal
    psegb = pseg.astype(jnp.bfloat16)    # exact for 0/1; single-pass MXU
    gamma = g_ref[...]
    beta = b_ref[...]

    acc = jnp.zeros(o_ref.shape, jnp.float32)
    for g in range(N_CHUNKS):            # 5 resident weight blocks, unrolled
        xg = x[:, g * C_CHUNK * IN_D_CAPS:(g + 1) * C_CHUNK * IN_D_CAPS]  # (TP,128)
        u = jnp.dot(xg, w_ref[g], preferred_element_type=jnp.float32)     # (TP,1024)
        for c in range(C_CHUNK):         # 8 c entries per chunk, unrolled
            if g * C_CHUNK + c >= NKL:   # skip zero-padded c entries
                continue
            u_c = u[:, c * MD:(c + 1) * MD]                               # (TP,128)
            # logits over m, broadcast back across the d lanes of each m segment
            logit = jnp.dot((u_c * v).astype(jnp.bfloat16), psegb,
                            preferred_element_type=jnp.float32)
            mx = jnp.max(logit, axis=-1, keepdims=True)                   # max over m
            e = jnp.exp(logit - mx)
            # sum over lanes = D * sum_m e; fold 1/D and the 1/(1+1e-10)
            # renormalization constant into one per-row scale (recip + mult,
            # no full-width divide; s2 == 1 by construction).
            row = pl.reciprocal(jnp.sum(e, axis=-1, keepdims=True),
                                approx=False) * (OUT_D_CAPS * QK_NORM)
            acc = acc + (e * row) * u_c
    o_ref[...] = _seg_layernorm(acc, pseg, gamma, beta)


# --------------------------------- glue (JAX) --------------------------------------
def input_expansion(x, kernel, stride):
    """Exact replica of CapsuleCONV.input_expansion, including the torch .view
    memory reinterpretation of the stacked (..., d, h_out*w_out) tensor as
    (..., h_out, w_out, d).  Built from kernel[0]*kernel[1] strided slices (9)
    instead of h_out*w_out window slices (169)."""
    b, n, h, w, d = x.shape
    h_out = (h - kernel[0]) // stride + 1
    w_out = (w - kernel[1]) // stride + 1
    cols = [x[:, :, ki:ki + stride * (h_out - 1) + 1:stride,
                    lj:lj + stride * (w_out - 1) + 1:stride, :]
            for ki in range(kernel[0]) for lj in range(kernel[1])]
    pt = jnp.stack(cols, axis=2).reshape(b, n, kernel[0], kernel[1], h_out, w_out, d)
    # pt[b,n,ki,lj,i,j,a] == x[b,n,stride*i+ki, stride*j+lj, a]  (true patches)
    # torch builds (b,n,k,l,d,ho*wo) and .view()s it to (b,n,k,l,ho,wo,d):
    out = jnp.transpose(pt, (0, 1, 2, 3, 6, 4, 5)).reshape(
        b, n, kernel[0], kernel[1], h_out, w_out, d)
    return out, h_out, w_out


def _prep_params(w, gamma, beta):
    """Weight / LayerNorm parameters in kernel layout (lane-dense, bf16 matmul ops)."""
    # w: (k, l, n, a, m, d) -> (c=(n,k,l), a, m*d), zero-pad c to NKL_PAD
    w_flat = jnp.transpose(w, (2, 0, 1, 3, 4, 5)).reshape(NKL, IN_D_CAPS, MD)
    w_pad = jnp.zeros((NKL_PAD, IN_D_CAPS, MD), jnp.float32).at[:NKL].set(
        w_flat.astype(jnp.float32))
    # dense first-pass weight with the uniform 1/M routing baked in: (640, 128) bf16
    # (1/M = 1/8 is a power of two, so baking it in is numerically exact)
    w_dense = (w_pad.reshape(XW, MD) * (1.0 / OUT_N_CAPS)).astype(jnp.bfloat16)
    # per-chunk block-diagonal vote weights: (N_CHUNKS, C_CHUNK*A, C_CHUNK*MD)
    # = (5, 128, 1024) bf16 (~1.3 MB, kept resident in VMEM by the routing kernel)
    w_c = w_pad.reshape(N_CHUNKS, C_CHUNK, IN_D_CAPS, MD)
    eye_c = jnp.eye(C_CHUNK, dtype=jnp.float32)
    w_blk = (eye_c[None, :, None, :, None] * w_c[:, :, :, None, :]).reshape(
        N_CHUNKS, C_CHUNK * IN_D_CAPS, C_CHUNK * MD).astype(jnp.bfloat16)
    # LayerNorm params tiled per output capsule m -> (1, 128)
    gamma_t = jnp.tile(gamma.astype(jnp.float32), OUT_N_CAPS).reshape(1, MD)
    beta_t = jnp.tile(beta.astype(jnp.float32), OUT_N_CAPS).reshape(1, MD)
    # segment-sum matrix: 16x16 all-ones blocks on the (m, m) diagonal
    pseg = jnp.asarray(
        np.kron(np.eye(OUT_N_CAPS), np.ones((OUT_D_CAPS, OUT_D_CAPS))), jnp.float32)
    return w_dense, w_blk, gamma_t, beta_t, pseg


def _prep_x(x, p_pad):
    """im2col + flatten to position-major lane-dense (P_pad, NKL_PAD*A) bf16."""
    inputs, ho, wo = input_expansion(x, KERNEL, STRIDE)     # (b,n,k,l,ho,wo,a)
    b = x.shape[0]
    p = b * ho * wo
    x2 = jnp.transpose(inputs, (0, 4, 5, 1, 2, 3, 6)).reshape(p, NKL * IN_D_CAPS)
    x2 = jnp.pad(x2, ((0, p_pad - p),
                      (0, XW - NKL * IN_D_CAPS)))           # 576 -> 640 lanes
    return x2.astype(jnp.bfloat16), p, ho, wo


def capsule_conv_forward(x, w, gamma, beta, num_iter=0, next_capsule_value=None):
    """Forward pass of CapsuleCONV (matrix_pose=False). num_iter is unused, as in
    the PyTorch forward.  Dropout(dp=0) == identity."""
    del num_iter
    b, _, h, wdt, _ = x.shape
    ho = (h - KERNEL[0]) // STRIDE + 1
    wo = (wdt - KERNEL[1]) // STRIDE + 1
    p = b * ho * wo

    # Adaptive position tile: one exact-size tile for small problems, <=512-row
    # tiles (>=2 "parallel" tiles on real sizes -> megacore on v7x) otherwise.
    tp = min(TP_CAP, _round_up(p, 8))
    p_pad = _round_up(p, tp)
    n_tiles = p_pad // tp

    x2, p, ho, wo = _prep_x(x, p_pad)
    w_dense, w_blk, gamma_t, beta_t, pseg = _prep_params(w, gamma, beta)

    cparams = pltpu.CompilerParams(
        dimension_semantics=("parallel",),
        vmem_limit_bytes=32 * 1024 * 1024)

    if next_capsule_value is None:
        out_flat = pl.pallas_call(
            first_pass_kernel,
            out_shape=jax.ShapeDtypeStruct((p_pad, MD), jnp.float32),
            grid=(n_tiles,),
            in_specs=[
                pl.BlockSpec((tp, XW), lambda i: (i, 0)),
                pl.BlockSpec((XW, MD), lambda i: (0, 0)),
                pl.BlockSpec((MD, MD), lambda i: (0, 0)),
                pl.BlockSpec((1, MD), lambda i: (0, 0)),
                pl.BlockSpec((1, MD), lambda i: (0, 0)),
            ],
            out_specs=pl.BlockSpec((tp, MD), lambda i: (i, 0)),
            compiler_params=cparams,
        )(x2, w_dense, pseg, gamma_t, beta_t)
    else:
        v = next_capsule_value                               # (B, M, ho, wo, D)
        # SCALE baked into v (it only feeds the logits, never the output)
        v2 = (jnp.transpose(v, (0, 2, 3, 1, 4)).reshape(p, MD).astype(jnp.float32)
              * SCALE)
        v2 = jnp.pad(v2, ((0, p_pad - p), (0, 0)))
        out_flat = pl.pallas_call(
            routing_kernel,
            out_shape=jax.ShapeDtypeStruct((p_pad, MD), jnp.float32),
            grid=(n_tiles,),
            in_specs=[
                pl.BlockSpec((tp, XW), lambda i: (i, 0)),              # full x row
                pl.BlockSpec((N_CHUNKS, C_CHUNK * IN_D_CAPS, C_CHUNK * MD),
                             lambda i: (0, 0, 0)),                     # resident W
                pl.BlockSpec((tp, MD), lambda i: (i, 0)),
                pl.BlockSpec((MD, MD), lambda i: (0, 0)),
                pl.BlockSpec((1, MD), lambda i: (0, 0)),
                pl.BlockSpec((1, MD), lambda i: (0, 0)),
            ],
            out_specs=pl.BlockSpec((tp, MD), lambda i: (i, 0)),
            compiler_params=cparams,
        )(x2, w_blk, v2, pseg, gamma_t, beta_t)

    # drop pad rows; (P, 128) -> (B, M, ho, wo, D)
    out = out_flat[:p].reshape(b, ho, wo, OUT_N_CAPS, OUT_D_CAPS)
    return jnp.transpose(out, (0, 3, 1, 2, 4))


# ------------------------------ pure-JAX reference ---------------------------------
def reference_forward(x, w, gamma, beta, next_capsule_value=None):
    """Pure-JAX reference.  The Pallas kernels compute the vote matmuls with bf16
    operands (f32 accumulation), so the reference applies the same input rounding;
    everything else is full f32 / HIGHEST precision."""
    xq = x.astype(jnp.bfloat16).astype(jnp.float32)
    wq = w.astype(jnp.bfloat16).astype(jnp.float32)
    inputs, ho, wo = input_expansion(xq, KERNEL, STRIDE)
    M = OUT_N_CAPS
    hp = jax.lax.Precision.HIGHEST
    if next_capsule_value is None:
        qk = jax.nn.softmax(
            jnp.zeros((IN_N_CAPS, KERNEL[0], KERNEL[1], M), jnp.float32), axis=3)
        ncv = jnp.einsum('nklm,bnklhwa,klnamd->bmhwd', qk, inputs, wq, precision=hp)
    else:
        logits = jnp.einsum('bnklhwa,klnamd,bmhwd->bnklmhw',
                            inputs, wq, next_capsule_value, precision=hp) * SCALE
        qk = jax.nn.softmax(logits, axis=4)
        qk = qk / (jnp.sum(qk, axis=4, keepdims=True) + 1e-10)
        ncv = jnp.einsum('bnklmhw,bnklhwa,klnamd->bmhwd',
                         qk, inputs, wq, precision=hp)
    mu = jnp.mean(ncv, axis=-1, keepdims=True)
    var = jnp.mean((ncv - mu) ** 2, axis=-1, keepdims=True)
    return (ncv - mu) * jax.lax.rsqrt(var + LN_EPS) * gamma + beta


# ------------------------------------- main ----------------------------------------
if __name__ == "__main__":
    key = jax.random.PRNGKey(0)
    kx, kw = jax.random.split(key)

    # H=W=27, stride 2, kernel 3 -> H_out = W_out = 13, P = 2*13*13 = 338 (tile 344)
    B, H, W = 2, 27, 27
    x = jax.random.normal(kx, (B, IN_N_CAPS, H, W, IN_D_CAPS), jnp.float32)

    # deterministic parameter init (same shapes / scale as the PyTorch __init__)
    weight_init_const = np.sqrt(
        OUT_N_CAPS / (IN_D_CAPS * IN_N_CAPS * KERNEL[0] * KERNEL[1]))
    w = weight_init_const * jax.random.normal(
        kw, (KERNEL[0], KERNEL[1], IN_N_CAPS, IN_D_CAPS, OUT_N_CAPS, OUT_D_CAPS),
        jnp.float32)
    gamma = jnp.ones((OUT_D_CAPS,), jnp.float32)    # LayerNorm weight init
    beta = jnp.zeros((OUT_D_CAPS,), jnp.float32)    # LayerNorm bias init

    # iteration 1: no routing state yet (next_capsule_value=None)
    v1 = capsule_conv_forward(x, w, gamma, beta, num_iter=0, next_capsule_value=None)
    # iteration 2: dot-product attention routing against v1
    v2 = capsule_conv_forward(x, w, gamma, beta, num_iter=1, next_capsule_value=v1)
    jax.block_until_ready((v1, v2))

    ho = (H - KERNEL[0]) // STRIDE + 1
    assert v1.shape == (B, OUT_N_CAPS, ho, ho, OUT_D_CAPS)
    assert v2.shape == (B, OUT_N_CAPS, ho, ho, OUT_D_CAPS)

    r1 = reference_forward(x, w, gamma, beta, None)
    r2 = reference_forward(x, w, gamma, beta, v1)   # same routing state as the kernel
    np.testing.assert_allclose(np.asarray(v1), np.asarray(r1), rtol=2e-2, atol=2e-2)
    np.testing.assert_allclose(np.asarray(v2), np.asarray(r2), rtol=2e-2, atol=2e-2)

    print("KERNEL_OK")
</pallas_src>

<mosaic_0001>
module attributes {stable_mosaic.version = 11 : i64} {
  func.func @first_pass_kernel(%arg0: i32, %arg1: memref<344x640xbf16, #tpu.memory_space<vmem>>, %arg2: memref<640x128xbf16, #tpu.memory_space<vmem>>, %arg3: memref<128x128xf32, #tpu.memory_space<vmem>>, %arg4: memref<1x128xf32, #tpu.memory_space<vmem>>, %arg5: memref<1x128xf32, #tpu.memory_space<vmem>>, %arg6: memref<344x128xf32, #tpu.memory_space<vmem>>) attributes {dimension_semantics = [#tpu.dimension_semantics<parallel>], iteration_bounds = array<i64: 1>, scalar_prefetch = 0 : i64, scratch_operands = 0 : i64, tpu.core_type = #tpu.core_type<tc>, window_params = [{transform_indices = @transform_0, window_bounds = array<i64: 344, 640>}, {pipeline_mode = #tpu.pipeline_mode<synchronous>, transform_indices = @transform_1, window_bounds = array<i64: 640, 128>}, {pipeline_mode = #tpu.pipeline_mode<synchronous>, transform_indices = @transform_2, window_bounds = array<i64: 128, 128>}, {pipeline_mode = #tpu.pipeline_mode<synchronous>, transform_indices = @transform_3, window_bounds = array<i64: 1, 128>}, {pipeline_mode = #tpu.pipeline_mode<synchronous>, transform_indices = @transform_4, window_bounds = array<i64: 1, 128>}, {transform_indices = @transform_5, window_bounds = array<i64: 344, 128>}]} {
    %c0 = arith.constant 0 : index
    %c0_0 = arith.constant 0 : index
    %0 = vector.load %arg1[%c0, %c0_0] : memref<344x640xbf16, #tpu.memory_space<vmem>>, vector<344x640xbf16>
    %c0_1 = arith.constant 0 : index
    %c0_2 = arith.constant 0 : index
    %1 = vector.load %arg2[%c0_1, %c0_2] : memref<640x128xbf16, #tpu.memory_space<vmem>>, vector<640x128xbf16>
    %cst = arith.constant dense<0.000000e+00> : vector<344x128xf32>
    %2 = tpu.matmul %0, %1, %cst {dimension_numbers = #tpu.dot_dimension_numbers<[1], [0], [0], [1], [0, 0, 1, 1], [], []>} : vector<344x640xbf16>, vector<640x128xbf16>, vector<344x128xf32> -> vector<344x128xf32>
    %c0_3 = arith.constant 0 : index
    %c0_4 = arith.constant 0 : index
    %3 = vector.load %arg3[%c0_3, %c0_4] : memref<128x128xf32, #tpu.memory_space<vmem>>, vector<128x128xf32>
    %c0_5 = arith.constant 0 : index
    %c0_6 = arith.constant 0 : index
    %4 = vector.load %arg4[%c0_5, %c0_6] : memref<1x128xf32, #tpu.memory_space<vmem>>, vector<1x128xf32>
    %c0_7 = arith.constant 0 : index
    %c0_8 = arith.constant 0 : index
    %5 = vector.load %arg5[%c0_7, %c0_8] : memref<1x128xf32, #tpu.memory_space<vmem>>, vector<1x128xf32>
    %cst_9 = arith.constant dense<0.000000e+00> : vector<344x128xf32>
    %6 = tpu.matmul %2, %3, %cst_9 {dimension_numbers = #tpu.dot_dimension_numbers<[1], [0], [0], [1], [0, 0, 1, 1], [], []>} : vector<344x128xf32>, vector<128x128xf32>, vector<344x128xf32> -> vector<344x128xf32>
    %cst_10 = arith.constant 6.250000e-02 : f32
    %7 = vector.broadcast %cst_10 : f32 to vector<344x128xf32>
    %8 = arith.mulf %6, %7 : vector<344x128xf32>
    %9 = arith.subf %2, %8 : vector<344x128xf32>
    %10 = arith.mulf %9, %9 : vector<344x128xf32>
    %cst_11 = arith.constant dense<0.000000e+00> : vector<344x128xf32>
    %11 = tpu.matmul %10, %3, %cst_11 {dimension_numbers = #tpu.dot_dimension_numbers<[1], [0], [0], [1], [0, 0, 1, 1], [], []>} : vector<344x128xf32>, vector<128x128xf32>, vector<344x128xf32> -> vector<344x128xf32>
    %cst_12 = arith.constant 6.250000e-02 : f32
    %12 = vector.broadcast %cst_12 : f32 to vector<344x128xf32>
    %13 = arith.mulf %11, %12 : vector<344x128xf32>
    %cst_13 = arith.constant 9.99999974E-6 : f32
    %14 = vector.broadcast %cst_13 : f32 to vector<344x128xf32>
    %15 = arith.addf %13, %14 : vector<344x128xf32>
    %16 = math.rsqrt %15 : vector<344x128xf32>
    %17 = arith.mulf %9, %16 : vector<344x128xf32>
    %18 = vector.broadcast %4 : vector<1x128xf32> to vector<344x128xf32>
    %19 = arith.mulf %17, %18 : vector<344x128xf32>
    %20 = vector.broadcast %5 : vector<1x128xf32> to vector<344x128xf32>
    %21 = arith.addf %19, %20 : vector<344x128xf32>
    %c0_14 = arith.constant 0 : index
    %c0_15 = arith.constant 0 : index
    %22 = vector.load %arg6[%c0_14, %c0_15] : memref<344x128xf32, #tpu.memory_space<vmem>>, vector<344x128xf32>
    tpu.vector_store %arg6[%c0_14, %c0_15], %21 {strides = array<i32>} : memref<344x128xf32, #tpu.memory_space<vmem>>, vector<344x128xf32>,
    return
  }
  func.func @transform_0(%arg0: i32) -> (i32, i32) {
    %c0_i32 = arith.constant 0 : i32
    %c0_i32_0 = arith.constant 0 : i32
    return %arg0, %c0_i32 : i32, i32
  }
  func.func @transform_1(%arg0: i32) -> (i32, i32) {
    %c0_i32 = arith.constant 0 : i32
    %c0_i32_0 = arith.constant 0 : i32
    %c0_i32_1 = arith.constant 0 : i32
    return %c0_i32, %c0_i32_0 : i32, i32
  }
  func.func @transform_2(%arg0: i32) -> (i32, i32) {
    %c0_i32 = arith.constant 0 : i32
    %c0_i32_0 = arith.constant 0 : i32
    %c0_i32_1 = arith.constant 0 : i32
    return %c0_i32, %c0_i32_0 : i32, i32
  }
  func.func @transform_3(%arg0: i32) -> (i32, i32) {
    %c0_i32 = arith.constant 0 : i32
    %c0_i32_0 = arith.constant 0 : i32
    %c0_i32_1 = arith.constant 0 : i32
    return %c0_i32, %c0_i32_0 : i32, i32
  }
  func.func @transform_4(%arg0: i32) -> (i32, i32) {
    %c0_i32 = arith.constant 0 : i32
    %c0_i32_0 = arith.constant 0 : i32
    %c0_i32_1 = arith.constant 0 : i32
    return %c0_i32, %c0_i32_0 : i32, i32
  }
  func.func @transform_5(%arg0: i32) -> (i32, i32) {
    %c0_i32 = arith.constant 0 : i32
    %c0_i32_0 = arith.constant 0 : i32
    return %arg0, %c0_i32 : i32, i32
  }
}

</mosaic_0001>

<llo_original>
// kernel: tpu_custom_call.1
$region0: #{tpu_custom_call.1}
  #allocation0 [shape = 'u32[]', space=smem, size = 0x4, offset = 0x4, fixed_abs, tag = 'smem constant byte address 0x4 - core index']
  #allocation1 [shape = 'u32[144,128]{1,0:T(1,128)}', space=vmem, size = 0x12000, scoped, tag = 'internal scratch']
  %s0 = inlined_call_operand.hbm [shape: bf16[344,640], index: 0, kind: input, shape index: {}]
  %s1 = inlined_call_operand.hbm [shape: bf16[640,128], index: 1, kind: input, shape index: {}]
  %s2 = inlined_call_operand.hbm [shape: f32[128,128], index: 2, kind: input, shape index: {}]
  %s3 = inlined_call_operand.vmem [shape: f32[1,128], index: 3, kind: input, shape index: {}]
  %s4 = inlined_call_operand.vmem [shape: f32[1,128], index: 4, kind: input, shape index: {}]
  %s5 = inlined_call_operand.hbm [shape: f32[344,128], index: 5, kind: output, shape index: {}]
  %s6 = sld [smem:[#allocation0]]
  $region42: #{tpu_custom_call.1} parent=0
    _
  %s8 = ssub.s32 1, %s6
  %s9 = scalar_select 0, %s8, %s6
  $region1: #{tpu_custom_call.1} parent=0
    #allocation2 [shape = 'u8[440320]{0}', space=vmem, size = 0x6b800, scoped, tag = 'input window, operand 0, single buffered']
    #allocation3 [shape = 's32[1]{0}', space=sflag, size = 0x4, scoped, tag = 'scoped memory for tpu_custom_call.1']
    #allocation4 [shape = 's32[1]{0}', space=sflag, size = 0x4, scoped, tag = 'scoped memory for tpu_custom_call.1']
    #allocation5 [shape = 'u8[163840]{0}', space=vmem, size = 0x28000, scoped, tag = 'input window, operand 1, single buffered']
    #allocation6 [shape = 's32[1]{0}', space=sflag, size = 0x4, scoped, tag = 'scoped memory for tpu_custom_call.1']
    #allocation7 [shape = 'u8[65536]{0}', space=vmem, size = 0x10000, scoped, tag = 'input window, operand 2, single buffered']
    #allocation8 [shape = 'u8[176128]{0}', space=vmem, size = 0x2b000, scoped, tag = 'output window, operand 0, single buffered']
    %10 = vsyncpa [#allocation3], 0
    %11 = vsyncpa [#allocation6], 0
    %12 = vsyncpa [#allocation4], 0
    // Predicated region
    $region2: #{tpu_custom_call.1} parent=1 // pred_check
      _
    $region3: #{tpu_custom_call.1} parent=1 // pred_check_branch
      %14 = sbr.rel (0) target = $region5
    $region4: #{tpu_custom_call.1} parent=1 // pred_region
      %s16 = ssub.s32 13760, 13760
      %17 = vsyncadd [#allocation3], %s16
      %s18 = sshll.u32 [#allocation2], 4
      %s19 = int_to_ptr.vmem [resolvable:$true] %s18
      %24 = dma.hbm_to_vmem [thread:$0]  %s0, 13760, %s19, [#allocation3], 320, 320, 20
    $region5: #{tpu_custom_call.1} parent=1 // pred_fallthru
      _
    // Predicated region
    $region6: #{tpu_custom_call.1} parent=1 // pred_check
      _
    $region7: #{tpu_custom_call.1} parent=1 // pred_check_branch
      %26 = sbr.rel (0) target = $region9
    $region8: #{tpu_custom_call.1} parent=1 // pred_region
      %s28 = ssub.s32 5120, 5120
      %29 = vsyncadd [#allocation6], %s28
      %s30 = sshll.u32 [#allocation5], 4
      %s31 = int_to_ptr.vmem [resolvable:$true] %s30
      %36 = dma.hbm_to_vmem [thread:$0]  %s1, 5120, %s31, [#allocation6], 64, 64, 4
    $region9: #{tpu_custom_call.1} parent=1 // pred_fallthru
      _
    // Predicated region
    $region10: #{tpu_custom_call.1} parent=1 // pred_check
      _
    $region11: #{tpu_custom_call.1} parent=1 // pred_check_branch
      %38 = sbr.rel (0) target = $region13
    $region12: #{tpu_custom_call.1} parent=1 // pred_region
      %s40 = ssub.s32 2048, 2048
      %41 = vsyncadd [#allocation6], %s40
      %s42 = sshll.u32 [#allocation7], 4
      %s43 = int_to_ptr.vmem [resolvable:$true] %s42
      %48 = dma.hbm_to_vmem [thread:$0]  %s2, 2048, %s43, [#allocation6], 128, 128, 8
    $region13: #{tpu_custom_call.1} parent=1 // pred_fallthru
      _
    // Predicated region
    $region14: #{tpu_custom_call.1} parent=1 // pred_check
      _
    $region15: #{tpu_custom_call.1} parent=1 // pred_check_branch
      %50 = sbr.rel (0) target = $region17
    $region16: #{tpu_custom_call.1} parent=1 // pred_region
      _
    $region17: #{tpu_custom_call.1} parent=1 // pred_fallthru
      _
    // Predicated region
    $region18: #{tpu_custom_call.1} parent=1 // pred_check
      _
    $region19: #{tpu_custom_call.1} parent=1 // pred_check_branch
      %52 = sbr.rel (0) target = $region21
    $region20: #{tpu_custom_call.1} parent=1 // pred_region
      _
    $region21: #{tpu_custom_call.1} parent=1 // pred_fallthru
      _
    // Predicated region
    $region22: #{tpu_custom_call.1} parent=1 // pred_check
      _
    $region23: #{tpu_custom_call.1} parent=1 // pred_check_branch
      %54 = sbr.rel (0) target = $region25
    $region24: #{tpu_custom_call.1} parent=1 // pred_region
      %55 = dma.done [#allocation3], 13760
    $region25: #{tpu_custom_call.1} parent=1 // pred_fallthru
      _
    // Predicated region
    $region26: #{tpu_custom_call.1} parent=1 // pred_check
      _
    $region27: #{tpu_custom_call.1} parent=1 // pred_check_branch
      %57 = sbr.rel (0) target = $region29
    $region28: #{tpu_custom_call.1} parent=1 // pred_region
      %58 = dma.done [#allocation6], 5120
    $region29: #{tpu_custom_call.1} parent=1 // pred_fallthru
      _
    // Predicated region
    $region30: #{tpu_custom_call.1} parent=1 // pred_check
      _
    $region31: #{tpu_custom_call.1} parent=1 // pred_check_branch
      %60 = sbr.rel (0) target = $region33
    $region32: #{tpu_custom_call.1} parent=1 // pred_region
      %61 = dma.done [#allocation6], 2048
    $region33: #{tpu_custom_call.1} parent=1 // pred_fallthru
      _
    %v63 = vld [vmem:[#allocation2] sm:$0xff]
    %v64 = vld [vmem:[#allocation2 + $0x8] sm:$0xff]
    %v65 = vld [vmem:[#allocation2 + $0x10] sm:$0xf]
    %v66 = vld [vmem:[#allocation2 + $0x14] sm:$0xff]
    %v67 = vld [vmem:[#allocation2 + $0x1c] sm:$0xff]
    %v68 = vld [vmem:[#allocation2 + $0x24] sm:$0xf]
    %v69 = vld [vmem:[#allocation2 + $0x28] sm:$0xff]
    %v70 = vld [vmem:[#allocation2 + $0x30] sm:$0xff]
    %v71 = vld [vmem:[#allocation2 + $0x38] sm:$0xf]
    %v72 = vld [vmem:[#allocation2 + $0x3c] sm:$0xff]
    %v73 = vld [vmem:[#allocation2 + $0x44] sm:$0xff]
    %v74 = vld [vmem:[#allocation2 + $0x4c] sm:$0xf]
    %v75 = vld [vmem:[#allocation2 + $0x50] sm:$0xff]
    %v76 = vld [vmem:[#allocation2 + $0x58] sm:$0xff]
    %v77 = vld [vmem:[#allocation2 + $0x60] sm:$0xf]
    %v78 = vld [vmem:[#allocation2 + $0x64] sm:$0xff]
    %v79 = vld [vmem:[#allocation2 + $0x6c] sm:$0xff]
    %v80 = vld [vmem:[#allocation2 + $0x74] sm:$0xf]
    %v81 = vld [vmem:[#allocation2 + $0x78] sm:$0xff]
    %v82 = vld [vmem:[#allocation2 + $0x80] sm:$0xff]
    %v83 = vld [vmem:[#allocation2 + $0x88] sm:$0xf]
    %v84 = vld [vmem:[#allocation2 + $0x8c] sm:$0xff]
    %v85 = vld [vmem:[#allocation2 + $0x94] sm:$0xff]
    %v86 = vld [vmem:[#allocation2 + $0x9c] sm:$0xf]
    %v87 = vld [vmem:[#allocation2 + $0xa0] sm:$0xff]
    %v88 = vld [vmem:[#allocation2 + $0xa8] sm:$0xff]
    %v89 = vld [vmem:[#allocation2 + $0xb0] sm:$0xf]
    %v90 = vld [vmem:[#allocation2 + $0xb4] sm:$0xff]
    %v91 = vld [vmem:[#allocation2 + $0xbc] sm:$0xff]
    %v92 = vld [vmem:[#allocation2 + $0xc4] sm:$0xf]
    %v93 = vld [vmem:[#allocation2 + $0xc8] sm:$0xff]
    %v94 = vld [vmem:[#allocation2 + $0xd0] sm:$0xff]
    %v95 = vld [vmem:[#allocation2 + $0xd8] sm:$0xf]
    %v96 = vld [vmem:[#allocation2 + $0xdc] sm:$0xff]
    %v97 = vld [vmem:[#allocation2 + $0xe4] sm:$0xff]
    %v98 = vld [vmem:[#allocation2 + $0xec] sm:$0xf]
    %v99 = vld [vmem:[#allocation2 + $0xf0] sm:$0xff]
    %v100 = vld [vmem:[#allocation2 + $0xf8] sm:$0xff]
    %v101 = vld [vmem:[#allocation2 + $0x100] sm:$0xf]
    %v102 = vld [vmem:[#allocation2 + $0x104] sm:$0xff]
    %v103 = vld [vmem:[#allocation2 + $0x10c] sm:$0xff]
    %v104 = vld [vmem:[#allocation2 + $0x114] sm:$0xf]
    %v105 = vld [vmem:[#allocation2 + $0x118] sm:$0xff]
    %v106 = vld [vmem:[#allocation2 + $0x120] sm:$0xff]
    %v107 = vld [vmem:[#allocation2 + $0x128] sm:$0xf]
    %v108 = vld [vmem:[#allocation2 + $0x12c] sm:$0xff]
    %v109 = vld [vmem:[#allocation2 + $0x134] sm:$0xff]
    %v110 = vld [vmem:[#allocation2 + $0x13c] sm:$0xf]
    %v111 = vld [vmem:[#allocation2 + $0x140] sm:$0xff]
    %v112 = vld [vmem:[#allocation2 + $0x148] sm:$0xff]
    %v113 = vld [vmem:[#allocation2 + $0x150] sm:$0xf]
    %v114 = vld [vmem:[#allocation2 + $0x154] sm:$0xff]
    %v115 = vld [vmem:[#allocation2 + $0x15c] sm:$0xff]
    %v116 = vld [vmem:[#allocation2 + $0x164] sm:$0xf]
    %v117 = vld [vmem:[#allocation2 + $0x168] sm:$0xff]
    %v118 = vld [vmem:[#allocation2 + $0x170] sm:$0xff]
    %v119 = vld [vmem:[#allocation2 + $0x178] sm:$0xf]
    %v120 = vld [vmem:[#allocation2 + $0x17c] sm:$0xff]
    %v121 = vld [vmem:[#allocation2 + $0x184] sm:$0xff]
    %v122 = vld [vmem:[#allocation2 + $0x18c] sm:$0xf]
    %v123 = vld [vmem:[#allocation2 + $0x190] sm:$0xff]
    %v124 = vld [vmem:[#allocation2 + $0x198] sm:$0xff]
    %v125 = vld [vmem:[#allocation2 + $0x1a0] sm:$0xf]
    %v126 = vld [vmem:[#allocation2 + $0x1a4] sm:$0xff]
    %v127 = vld [vmem:[#allocation2 + $0x1ac] sm:$0xff]
    %v128 = vld [vmem:[#allocation2 + $0x1b4] sm:$0xf]
    %v129 = vld [vmem:[#allocation2 + $0x1b8] sm:$0xff]
    %v130 = vld [vmem:[#allocation2 + $0x1c0] sm:$0xff]
    %v131 = vld [vmem:[#allocation2 + $0x1c8] sm:$0xf]
    %v132 = vld [vmem:[#allocation2 + $0x1cc] sm:$0xff]
    %v133 = vld [vmem:[#allocation2 + $0x1d4] sm:$0xff]
    %v134 = vld [vmem:[#allocation2 + $0x1dc] sm:$0xf]
    %v135 = vld [vmem:[#allocation2 + $0x1e0] sm:$0xff]
    %v136 = vld [vmem:[#allocation2 + $0x1e8] sm:$0xff]
    %v137 = vld [vmem:[#allocation2 + $0x1f0] sm:$0xf]
    %v138 = vld [vmem:[#allocation2 + $0x1f4] sm:$0xff]
    %v139 = vld [vmem:[#allocation2 + $0x1fc] sm:$0xff]
    %v140 = vld [vmem:[#allocation2 + $0x204] sm:$0xf]
    %v141 = vld [vmem:[#allocation2 + $0x208] sm:$0xff]
    %v142 = vld [vmem:[#allocation2 + $0x210] sm:$0xff]
    %v143 = vld [vmem:[#allocation2 + $0x218] sm:$0xf]
    %v144 = vld [vmem:[#allocation2 + $0x21c] sm:$0xff]
    %v145 = vld [vmem:[#allocation2 + $0x224] sm:$0xff]
    %v146 = vld [vmem:[#allocation2 + $0x22c] sm:$0xf]
    %v147 = vld [vmem:[#allocation2 + $0x230] sm:$0xff]
    %v148 = vld [vmem:[#allocation2 + $0x238] sm:$0xff]
    %v149 = vld [vmem:[#allocation2 + $0x240] sm:$0xf]
    %v150 = vld [vmem:[#allocation2 + $0x244] sm:$0xff]
    %v151 = vld [vmem:[#allocation2 + $0x24c] sm:$0xff]
    %v152 = vld [vmem:[#allocation2 + $0x254] sm:$0xf]
    %v153 = vld [vmem:[#allocation2 + $0x258] sm:$0xff]
    %v154 = vld [vmem:[#allocation2 + $0x260] sm:$0xff]
    %v155 = vld [vmem:[#allocation2 + $0x268] sm:$0xf]
    %v156 = vld [vmem:[#allocation2 + $0x26c] sm:$0xff]
    %v157 = vld [vmem:[#allocation2 + $0x274] sm:$0xff]
    %v158 = vld [vmem:[#allocation2 + $0x27c] sm:$0xf]
    %v159 = vld [vmem:[#allocation2 + $0x280] sm:$0xff]
    %v160 = vld [vmem:[#allocation2 + $0x288] sm:$0xff]
    %v161 = vld [vmem:[#allocation2 + $0x290] sm:$0xf]
    %v162 = vld [vmem:[#allocation2 + $0x294] sm:$0xff]
    %v163 = vld [vmem:[#allocation2 + $0x29c] sm:$0xff]
    %v164 = vld [vmem:[#allocation2 + $0x2a4] sm:$0xf]
    %v165 = vld [vmem:[#allocation2 + $0x2a8] sm:$0xff]
    %v166 = vld [vmem:[#allocation2 + $0x2b0] sm:$0xff]
    %v167 = vld [vmem:[#allocation2 + $0x2b8] sm:$0xf]
    %v168 = vld [vmem:[#allocation2 + $0x2bc] sm:$0xff]
    %v169 = vld [vmem:[#allocation2 + $0x2c4] sm:$0xff]
    %v170 = vld [vmem:[#allocation2 + $0x2cc] sm:$0xf]
    %v171 = vld [vmem:[#allocation2 + $0x2d0] sm:$0xff]
    %v172 = vld [vmem:[#allocation2 + $0x2d8] sm:$0xff]
    %v173 = vld [vmem:[#allocation2 + $0x2e0] sm:$0xf]
    %v174 = vld [vmem:[#allocation2 + $0x2e4] sm:$0xff]
    %v175 = vld [vmem:[#allocation2 + $0x2ec] sm:$0xff]
    %v176 = vld [vmem:[#allocation2 + $0x2f4] sm:$0xf]
    %v177 = vld [vmem:[#allocation2 + $0x2f8] sm:$0xff]
    %v178 = vld [vmem:[#allocation2 + $0x300] sm:$0xff]
    %v179 = vld [vmem:[#allocation2 + $0x308] sm:$0xf]
    %v180 = vld [vmem:[#allocation2 + $0x30c] sm:$0xff]
    %v181 = vld [vmem:[#allocation2 + $0x314] sm:$0xff]
    %v182 = vld [vmem:[#allocation2 + $0x31c] sm:$0xf]
    %v183 = vld [vmem:[#allocation2 + $0x320] sm:$0xff]
    %v184 = vld [vmem:[#allocation2 + $0x328] sm:$0xff]
    %v185 = vld [vmem:[#allocation2 + $0x330] sm:$0xf]
    %v186 = vld [vmem:[#allocation2 + $0x334] sm:$0xff]
    %v187 = vld [vmem:[#allocation2 + $0x33c] sm:$0xff]
    %v188 = vld [vmem:[#allocation2 + $0x344] sm:$0xf]
    %v189 = vld [vmem:[#allocation2 + $0x348] sm:$0xff]
    %v190 = vld [vmem:[#allocation2 + $0x350] sm:$0xff]
    %v191 = vld [vmem:[#allocation2 + $0x358] sm:$0xf]
    %v192 = vld [vmem:[#allocation5] sm:$0xf]
    %v193 = vld [vmem:[#allocation5 + $0x4] sm:$0xf]
    %v194 = vld [vmem:[#allocation5 + $0x8] sm:$0xf]
    %v195 = vld [vmem:[#allocation5 + $0xc] sm:$0xf]
    %v196 = vld [vmem:[#allocation5 + $0x10] sm:$0xf]
    %v197 = vld [vmem:[#allocation5 + $0x14] sm:$0xf]
    %v198 = vld [vmem:[#allocation5 + $0x18] sm:$0xf]
    %v199 = vld [vmem:[#allocation5 + $0x1c] sm:$0xf]
    %v200 = vld [vmem:[#allocation5 + $0x20] sm:$0xf]
    %v201 = vld [vmem:[#allocation5 + $0x24] sm:$0xf]
    %v202 = vld [vmem:[#allocation5 + $0x28] sm:$0xf]
    %v203 = vld [vmem:[#allocation5 + $0x2c] sm:$0xf]
    %v204 = vld [vmem:[#allocation5 + $0x30] sm:$0xf]
    %v205 = vld [vmem:[#allocation5 + $0x34] sm:$0xf]
    %v206 = vld [vmem:[#allocation5 + $0x38] sm:$0xf]
    %v207 = vld [vmem:[#allocation5 + $0x3c] sm:$0xf]
    %v208 = vld [vmem:[#allocation5 + $0x40] sm:$0xf]
    %v209 = vld [vmem:[#allocation5 + $0x44] sm:$0xf]
    %v210 = vld [vmem:[#allocation5 + $0x48] sm:$0xf]
    %v211 = vld [vmem:[#allocation5 + $0x4c] sm:$0xf]
    %v212 = vld [vmem:[#allocation5 + $0x50] sm:$0xf]
    %v213 = vld [vmem:[#allocation5 + $0x54] sm:$0xf]
    %v214 = vld [vmem:[#allocation5 + $0x58] sm:$0xf]
    %v215 = vld [vmem:[#allocation5 + $0x5c] sm:$0xf]
    %v216 = vld [vmem:[#allocation5 + $0x60] sm:$0xf]
    %v217 = vld [vmem:[#allocation5 + $0x64] sm:$0xf]
    %v218 = vld [vmem:[#allocation5 + $0x68] sm:$0xf]
    %v219 = vld [vmem:[#allocation5 + $0x6c] sm:$0xf]
    %v220 = vld [vmem:[#allocation5 + $0x70] sm:$0xf]
    %v221 = vld [vmem:[#allocation5 + $0x74] sm:$0xf]
    %v222 = vld [vmem:[#allocation5 + $0x78] sm:$0xf]
    %v223 = vld [vmem:[#allocation5 + $0x7c] sm:$0xf]
    %v224 = vld [vmem:[#allocation5 + $0x80] sm:$0xf]
    %v225 = vld [vmem:[#allocation5 + $0x84] sm:$0xf]
    %v226 = vld [vmem:[#allocation5 + $0x88] sm:$0xf]
    %v227 = vld [vmem:[#allocation5 + $0x8c] sm:$0xf]
    %v228 = vld [vmem:[#allocation5 + $0x90] sm:$0xf]
    %v229 = vld [vmem:[#allocation5 + $0x94] sm:$0xf]
    %v230 = vld [vmem:[#allocation5 + $0x98] sm:$0xf]
    %v231 = vld [vmem:[#allocation5 + $0x9c] sm:$0xf]
    %v232 = vld [vmem:[#allocation5 + $0xa0] sm:$0xf]
    %v233 = vld [vmem:[#allocation5 + $0xa4] sm:$0xf]
    %v234 = vld [vmem:[#allocation5 + $0xa8] sm:$0xf]
    %v235 = vld [vmem:[#allocation5 + $0xac] sm:$0xf]
    %v236 = vld [vmem:[#allocation5 + $0xb0] sm:$0xf]
    %v237 = vld [vmem:[#allocation5 + $0xb4] sm:$0xf]
    %v238 = vld [vmem:[#allocation5 + $0xb8] sm:$0xf]
    %v239 = vld [vmem:[#allocation5 + $0xbc] sm:$0xf]
    %v240 = vld [vmem:[#allocation5 + $0xc0] sm:$0xf]
    %v241 = vld [vmem:[#allocation5 + $0xc4] sm:$0xf]
    %v242 = vld [vmem:[#allocation5 + $0xc8] sm:$0xf]
    %v243 = vld [vmem:[#allocation5 + $0xcc] sm:$0xf]
    %v244 = vld [vmem:[#allocation5 + $0xd0] sm:$0xf]
    %v245 = vld [vmem:[#allocation5 + $0xd4] sm:$0xf]
    %v246 = vld [vmem:[#allocation5 + $0xd8] sm:$0xf]
    %v247 = vld [vmem:[#allocation5 + $0xdc] sm:$0xf]
    %v248 = vld [vmem:[#allocation5 + $0xe0] sm:$0xf]
    %v249 = vld [vmem:[#allocation5 + $0xe4] sm:$0xf]
    %v250 = vld [vmem:[#allocation5 + $0xe8] sm:$0xf]
    %v251 = vld [vmem:[#allocation5 + $0xec] sm:$0xf]
    %v252 = vld [vmem:[#allocation5 + $0xf0] sm:$0xf]
    %v253 = vld [vmem:[#allocation5 + $0xf4] sm:$0xf]
    %v254 = vld [vmem:[#allocation5 + $0xf8] sm:$0xf]
    %v255 = vld [vmem:[#allocation5 + $0xfc] sm:$0xf]
    %v256 = vld [vmem:[#allocation5 + $0x100] sm:$0xf]
    %v257 = vld [vmem:[#allocation5 + $0x104] sm:$0xf]
    %v258 = vld [vmem:[#allocation5 + $0x108] sm:$0xf]
    %v259 = vld [vmem:[#allocation5 + $0x10c] sm:$0xf]
    %v260 = vld [vmem:[#allocation5 + $0x110] sm:$0xf]
    %v261 = vld [vmem:[#allocation5 + $0x114] sm:$0xf]
    %v262 = vld [vmem:[#allocation5 + $0x118] sm:$0xf]
    %v263 = vld [vmem:[#allocation5 + $0x11c] sm:$0xf]
    %v264 = vld [vmem:[#allocation5 + $0x120] sm:$0xf]
    %v265 = vld [vmem:[#allocation5 + $0x124] sm:$0xf]
    %v266 = vld [vmem:[#allocation5 + $0x128] sm:$0xf]
    %v267 = vld [vmem:[#allocation5 + $0x12c] sm:$0xf]
    %v268 = vld [vmem:[#allocation5 + $0x130] sm:$0xf]
    %v269 = vld [vmem:[#allocation5 + $0x134] sm:$0xf]
    %v270 = vld [vmem:[#allocation5 + $0x138] sm:$0xf]
    %v271 = vld [vmem:[#allocation5 + $0x13c] sm:$0xf]
    %v401 = vunpack.c.l.b16 %v63
    %v402 = vunpack.c.h.b16 %v63
    %v403 = vunpack.c.l.b16 %v64
    %v404 = vunpack.c.h.b16 %v64
    %v405 = vunpack.c.l.b16 %v65
    %v406 = vunpack.c.l.b16 %v66
    %v407 = vunpack.c.h.b16 %v66
    %v408 = vunpack.c.l.b16 %v67
    %v409 = vunpack.c.h.b16 %v67
    %v410 = vunpack.c.l.b16 %v68
    %v411 = vunpack.c.l.b16 %v69
    %v412 = vunpack.c.h.b16 %v69
    %v413 = vunpack.c.l.b16 %v70
    %v414 = vunpack.c.h.b16 %v70
    %v415 = vunpack.c.l.b16 %v71
    %v416 = vunpack.c.l.b16 %v72
    %v417 = vunpack.c.h.b16 %v72
    %v418 = vunpack.c.l.b16 %v73
    %v419 = vunpack.c.h.b16 %v73
    %v420 = vunpack.c.l.b16 %v74
    %v421 = vunpack.c.l.b16 %v75
    %v422 = vunpack.c.h.b16 %v75
    %v423 = vunpack.c.l.b16 %v76
    %v424 = vunpack.c.h.b16 %v76
    %v425 = vunpack.c.l.b16 %v77
    %v426 = vunpack.c.l.b16 %v78
    %v427 = vunpack.c.h.b16 %v78
    %v428 = vunpack.c.l.b16 %v79
    %v429 = vunpack.c.h.b16 %v79
    %v430 = vunpack.c.l.b16 %v80
    %v431 = vunpack.c.l.b16 %v81
    %v432 = vunpack.c.h.b16 %v81
    %v433 = vunpack.c.l.b16 %v82
    %v434 = vunpack.c.h.b16 %v82
    %v435 = vunpack.c.l.b16 %v83
    %v436 = vunpack.c.l.b16 %v84
    %v437 = vunpack.c.h.b16 %v84
    %v438 = vunpack.c.l.b16 %v85
    %v439 = vunpack.c.h.b16 %v85
    %v440 = vunpack.c.l.b16 %v86
    %v441 = vunpack.c.l.b16 %v87
    %v442 = vunpack.c.h.b16 %v87
    %v443 = vunpack.c.l.b16 %v88
    %v444 = vunpack.c.h.b16 %v88
    %v445 = vunpack.c.l.b16 %v89
    %v446 = vunpack.c.l.b16 %v90
    %v447 = vunpack.c.h.b16 %v90
    %v448 = vunpack.c.l.b16 %v91
    %v449 = vunpack.c.h.b16 %v91
    %v450 = vunpack.c.l.b16 %v92
    %v451 = vunpack.c.l.b16 %v93
    %v452 = vunpack.c.h.b16 %v93
    %v453 = vunpack.c.l.b16 %v94
    %v454 = vunpack.c.h.b16 %v94
    %v455 = vunpack.c.l.b16 %v95
    %v456 = vunpack.c.l.b16 %v96
    %v457 = vunpack.c.h.b16 %v96
    %v458 = vunpack.c.l.b16 %v97
    %v459 = vunpack.c.h.b16 %v97
    %v460 = vunpack.c.l.b16 %v98
    %v461 = vunpack.c.l.b16 %v99
    %v462 = vunpack.c.h.b16 %v99
    %v463 = vunpack.c.l.b16 %v100
    %v464 = vunpack.c.h.b16 %v100
    %v465 = vunpack.c.l.b16 %v101
    %v466 = vunpack.c.l.b16 %v102
    %v467 = vunpack.c.h.b16 %v102
    %v468 = vunpack.c.l.b16 %v103
    %v469 = vunpack.c.h.b16 %v103
    %v470 = vunpack.c.l.b16 %v104
    %v471 = vunpack.c.l.b16 %v105
    %v472 = vunpack.c.h.b16 %v105
    %v473 = vunpack.c.l.b16 %v106
    %v474 = vunpack.c.h.b16 %v106
    %v475 = vunpack.c.l.b16 %v107
    %v476 = vunpack.c.l.b16 %v108
    %v477 = vunpack.c.h.b16 %v108
    %v478 = vunpack.c.l.b16 %v109
    %v479 = vunpack.c.h.b16 %v109
    %v480 = vunpack.c.l.b16 %v110
    %v481 = vunpack.c.l.b16 %v111
    %v482 = vunpack.c.h.b16 %v111
    %v483 = vunpack.c.l.b16 %v112
    %v484 = vunpack.c.h.b16 %v112
    %v485 = vunpack.c.l.b16 %v113
    %v486 = vunpack.c.l.b16 %v114
    %v487 = vunpack.c.h.b16 %v114
    %v488 = vunpack.c.l.b16 %v115
    %v489 = vunpack.c.h.b16 %v115
    %v490 = vunpack.c.l.b16 %v116
    %v491 = vunpack.c.l.b16 %v117
    %v492 = vunpack.c.h.b16 %v117
    %v493 = vunpack.c.l.b16 %v118
    %v494 = vunpack.c.h.b16 %v118
    %v495 = vunpack.c.l.b16 %v119
    %v496 = vunpack.c.l.b16 %v120
    %v497 = vunpack.c.h.b16 %v120
    %v498 = vunpack.c.l.b16 %v121
    %v499 = vunpack.c.h.b16 %v121
    %v500 = vunpack.c.l.b16 %v122
    %v501 = vunpack.c.l.b16 %v123
    %v502 = vunpack.c.h.b16 %v123
    %v503 = vunpack.c.l.b16 %v124
    %v504 = vunpack.c.h.b16 %v124
    %v505 = vunpack.c.l.b16 %v125
    %v506 = vunpack.c.l.b16 %v126
    %v507 = vunpack.c.h.b16 %v126
    %v508 = vunpack.c.l.b16 %v127
    %v509 = vunpack.c.h.b16 %v127
    %v510 = vunpack.c.l.b16 %v128
    %v511 = vunpack.c.l.b16 %v129
    %v512 = vunpack.c.h.b16 %v129
    %v513 = vunpack.c.l.b16 %v130
    %v514 = vunpack.c.h.b16 %v130
    %v515 = vunpack.c.l.b16 %v131
    %v516 = vunpack.c.l.b16 %v132
    %v517 = vunpack.c.h.b16 %v132
    %v518 = vunpack.c.l.b16 %v133
    %v519 = vunpack.c.h.b16 %v133
    %v520 = vunpack.c.l.b16 %v134
    %v521 = vunpack.c.l.b16 %v135
    %v522 = vunpack.c.h.b16 %v135
    %v523 = vunpack.c.l.b16 %v136
    %v524 = vunpack.c.h.b16 %v136
    %v525 = vunpack.c.l.b16 %v137
    %v526 = vunpack.c.l.b16 %v138
    %v527 = vunpack.c.h.b16 %v138
    %v528 = vunpack.c.l.b16 %v139
    %v529 = vunpack.c.h.b16 %v139
    %v530 = vunpack.c.l.b16 %v140
    %v531 = vunpack.c.l.b16 %v141
    %v532 = vunpack.c.h.b16 %v141
    %v533 = vunpack.c.l.b16 %v142
    %v534 = vunpack.c.h.b16 %v142
    %v535 = vunpack.c.l.b16 %v143
    %v536 = vunpack.c.l.b16 %v144
    %v537 = vunpack.c.h.b16 %v144
    %v538 = vunpack.c.l.b16 %v145
    %v539 = vunpack.c.h.b16 %v145
    %v540 = vunpack.c.l.b16 %v146
    %v541 = vunpack.c.l.b16 %v147
    %v542 = vunpack.c.h.b16 %v147
    %v543 = vunpack.c.l.b16 %v148
    %v544 = vunpack.c.h.b16 %v148
    %v545 = vunpack.c.l.b16 %v149
    %v546 = vunpack.c.l.b16 %v150
    %v547 = vunpack.c.h.b16 %v150
    %v548 = vunpack.c.l.b16 %v151
    %v549 = vunpack.c.h.b16 %v151
    %v550 = vunpack.c.l.b16 %v152
    %v551 = vunpack.c.l.b16 %v153
    %v552 = vunpack.c.h.b16 %v153
    %v553 = vunpack.c.l.b16 %v154
    %v554 = vunpack.c.h.b16 %v154
    %v555 = vunpack.c.l.b16 %v155
    %v556 = vunpack.c.l.b16 %v156
    %v557 = vunpack.c.h.b16 %v156
    %v558 = vunpack.c.l.b16 %v157
    %v559 = vunpack.c.h.b16 %v157
    %v560 = vunpack.c.l.b16 %v158
    %v561 = vunpack.c.l.b16 %v159
    %v562 = vunpack.c.h.b16 %v159
    %v563 = vunpack.c.l.b16 %v160
    %v564 = vunpack.c.h.b16 %v160
    %v565 = vunpack.c.l.b16 %v161
    %v566 = vunpack.c.l.b16 %v162
    %v567 = vunpack.c.h.b16 %v162
    %v568 = vunpack.c.l.b16 %v163
    %v569 = vunpack.c.h.b16 %v163
    %v570 = vunpack.c.l.b16 %v164
    %v571 = vunpack.c.l.b16 %v165
    %v572 = vunpack.c.h.b16 %v165
    %v573 = vunpack.c.l.b16 %v166
    %v574 = vunpack.c.h.b16 %v166
    %v575 = vunpack.c.l.b16 %v167
    %v576 = vunpack.c.l.b16 %v168
    %v577 = vunpack.c.h.b16 %v168
    %v578 = vunpack.c.l.b16 %v169
    %v579 = vunpack.c.h.b16 %v169
    %v580 = vunpack.c.l.b16 %v170
    %v581 = vunpack.c.l.b16 %v171
    %v582 = vunpack.c.h.b16 %v171
    %v583 = vunpack.c.l.b16 %v172
    %v584 = vunpack.c.h.b16 %v172
    %v585 = vunpack.c.l.b16 %v173
    %v586 = vunpack.c.l.b16 %v174
    %v587 = vunpack.c.h.b16 %v174
    %v588 = vunpack.c.l.b16 %v175
    %v589 = vunpack.c.h.b16 %v175
    %v590 = vunpack.c.l.b16 %v176
    %v591 = vunpack.c.l.b16 %v177
    %v592 = vunpack.c.h.b16 %v177
    %v593 = vunpack.c.l.b16 %v178
    %v594 = vunpack.c.h.b16 %v178
    %v595 = vunpack.c.l.b16 %v179
    %v596 = vunpack.c.l.b16 %v180
    %v597 = vunpack.c.h.b16 %v180
    %v598 = vunpack.c.l.b16 %v181
    %v599 = vunpack.c.h.b16 %v181
    %v600 = vunpack.c.l.b16 %v182
    %v601 = vunpack.c.l.b16 %v183
    %v602 = vunpack.c.h.b16 %v183
    %v603 = vunpack.c.l.b16 %v184
    %v604 = vunpack.c.h.b16 %v184
    %v605 = vunpack.c.l.b16 %v185
    %v606 = vunpack.c.l.b16 %v186
    %v607 = vunpack.c.h.b16 %v186
    %v608 = vunpack.c.l.b16 %v187
    %v609 = vunpack.c.h.b16 %v187
    %v610 = vunpack.c.l.b16 %v188
    %v611 = vunpack.c.l.b16 %v189
    %v612 = vunpack.c.h.b16 %v189
    %v613 = vunpack.c.l.b16 %v190
    %v614 = vunpack.c.h.b16 %v190
    %v615 = vunpack.c.l.b16 %v191
    %v616 = vpack.c.b16 %v406, %v401
    %v617 = vpack.c.b16 %v407, %v402
    %v618 = vpack.c.b16 %v408, %v403
    %v619 = vpack.c.b16 %v409, %v404
    %v620 = vpack.c.b16 %v410, %v405
    %v621 = vpack.c.b16 %v416, %v411
    %v622 = vpack.c.b16 %v417, %v412
    %v623 = vpack.c.b16 %v418, %v413
    %v624 = vpack.c.b16 %v419, %v414
    %v625 = vpack.c.b16 %v420, %v415
    %v626 = vpack.c.b16 %v426, %v421
    %v627 = vpack.c.b16 %v427, %v422
    %v628 = vpack.c.b16 %v428, %v423
    %v629 = vpack.c.b16 %v429, %v424
    %v630 = vpack.c.b16 %v430, %v425
    %v631 = vpack.c.b16 %v436, %v431
    %v632 = vpack.c.b16 %v437, %v432
    %v633 = vpack.c.b16 %v438, %v433
    %v634 = vpack.c.b16 %v439, %v434
    %v635 = vpack.c.b16 %v440, %v435
    %v636 = vpack.c.b16 %v446, %v441
    %v637 = vpack.c.b16 %v447, %v442
    %v638 = vpack.c.b16 %v448, %v443
    %v639 = vpack.c.b16 %v449, %v444
    %v640 = vpack.c.b16 %v450, %v445
    %v641 = vpack.c.b16 %v456, %v451
    %v642 = vpack.c.b16 %v457, %v452
    %v643 = vpack.c.b16 %v458, %v453
    %v644 = vpack.c.b16 %v459, %v454
    %v645 = vpack.c.b16 %v460, %v455
    %v646 = vpack.c.b16 %v466, %v461
    %v647 = vpack.c.b16 %v467, %v462
    %v648 = vpack.c.b16 %v468, %v463
    %v649 = vpack.c.b16 %v469, %v464
    %v650 = vpack.c.b16 %v470, %v465
    %v651 = vpack.c.b16 %v476, %v471
    %v652 = vpack.c.b16 %v477, %v472
    %v653 = vpack.c.b16 %v478, %v473
    %v654 = vpack.c.b16 %v479, %v474
    %v655 = vpack.c.b16 %v480, %v475
    %v656 = vpack.c.b16 %v486, %v481
    %v657 = vpack.c.b16 %v487, %v482
    %v658 = vpack.c.b16 %v488, %v483
    %v659 = vpack.c.b16 %v489, %v484
    %v660 = vpack.c.b16 %v490, %v485
    %v661 = vpack.c.b16 %v496, %v491
    %v662 = vpack.c.b16 %v497, %v492
    %v663 = vpack.c.b16 %v498, %v493
    %v664 = vpack.c.b16 %v499, %v494
    %v665 = vpack.c.b16 %v500, %v495
    %v666 = vpack.c.b16 %v506, %v501
    %v667 = vpack.c.b16 %v507, %v502
    %v668 = vpack.c.b16 %v508, %v503
    %v669 = vpack.c.b16 %v509, %v504
    %v670 = vpack.c.b16 %v510, %v505
    %v671 = vpack.c.b16 %v516, %v511
    %v672 = vpack.c.b16 %v517, %v512
    %v673 = vpack.c.b16 %v518, %v513
    %v674 = vpack.c.b16 %v519, %v514
    %v675 = vpack.c.b16 %v520, %v515
    %v676 = vpack.c.b16 %v526, %v521
    %v677 = vpack.c.b16 %v527, %v522
    %v678 = vpack.c.b16 %v528, %v523
    %v679 = vpack.c.b16 %v529, %v524
    %v680 = vpack.c.b16 %v530, %v525
    %v681 = vpack.c.b16 %v536, %v531
    %v682 = vpack.c.b16 %v537, %v532
    %v683 = vpack.c.b16 %v538, %v533
    %v684 = vpack.c.b16 %v539, %v534
    %v685 = vpack.c.b16 %v540, %v535
    %v686 = vpack.c.b16 %v546, %v541
    %v687 = vpack.c.b16 %v547, %v542
    %v688 = vpack.c.b16 %v548, %v543
    %v689 = vpack.c.b16 %v549, %v544
    %v690 = vpack.c.b16 %v550, %v545
    %v691 = vpack.c.b16 %v556, %v551
    %v692 = vpack.c.b16 %v557, %v552
    %v693 = vpack.c.b16 %v558, %v553
    %v694 = vpack.c.b16 %v559, %v554
    %v695 = vpack.c.b16 %v560, %v555
    %v696 = vpack.c.b16 %v566, %v561
    %v697 = vpack.c.b16 %v567, %v562
    %v698 = vpack.c.b16 %v568, %v563
    %v699 = vpack.c.b16 %v569, %v564
    %v700 = vpack.c.b16 %v570, %v565
    %v701 = vpack.c.b16 %v576, %v571
    %v702 = vpack.c.b16 %v577, %v572
    %v703 = vpack.c.b16 %v578, %v573
    %v704 = vpack.c.b16 %v579, %v574
    %v705 = vpack.c.b16 %v580, %v575
    %v706 = vpack.c.b16 %v586, %v581
    %v707 = vpack.c.b16 %v587, %v582
    %v708 = vpack.c.b16 %v588, %v583
    %v709 = vpack.c.b16 %v589, %v584
    %v710 = vpack.c.b16 %v590, %v585
    %v711 = vpack.c.b16 %v596, %v591
    %v712 = vpack.c.b16 %v597, %v592
    %v713 = vpack.c.b16 %v598, %v593
    %v714 = vpack.c.b16 %v599, %v594
    %v715 = vpack.c.b16 %v600, %v595
    %v716 = vpack.c.b16 %v606, %v601
    %v717 = vpack.c.b16 %v607, %v602
    %v718 = vpack.c.b16 %v608, %v603
    %v719 = vpack.c.b16 %v609, %v604
    %v720 = vpack.c.b16 %v610, %v605
    %v721 = vpack.c.b16 %v611, %v611
    %v722 = vpack.c.b16 %v612, %v612
    %v723 = vpack.c.b16 %v613, %v613
    %v724 = vpack.c.b16 %v614, %v614
    %v725 = vpack.c.b16 %v615, %v615
    %v916 = vunpack.c.l.b16 %v192
    %v917 = vunpack.c.l.b16 %v193
    %v918 = vunpack.c.l.b16 %v194
    %v919 = vunpack.c.l.b16 %v195
    %v920 = vunpack.c.l.b16 %v196
    %v921 = vunpack.c.l.b16 %v197
    %v922 = vunpack.c.l.b16 %v198
    %v923 = vunpack.c.l.b16 %v199
    %v924 = vunpack.c.l.b16 %v200
    %v925 = vunpack.c.l.b16 %v201
    %v926 = vunpack.c.l.b16 %v202
    %v927 = vunpack.c.l.b16 %v203
    %v928 = vunpack.c.l.b16 %v204
    %v929 = vunpack.c.l.b16 %v205
    %v930 = vunpack.c.l.b16 %v206
    %v931 = vunpack.c.l.b16 %v207
    %v932 = vunpack.c.l.b16 %v208
    %v933 = vunpack.c.l.b16 %v209
    %v934 = vunpack.c.l.b16 %v210
    %v935 = vunpack.c.l.b16 %v211
    %v936 = vunpack.c.l.b16 %v212
    %v937 = vunpack.c.l.b16 %v213
    %v938 = vunpack.c.l.b16 %v214
    %v939 = vunpack.c.l.b16 %v215
    %v940 = vunpack.c.l.b16 %v216
    %v941 = vunpack.c.l.b16 %v217
    %v942 = vunpack.c.l.b16 %v218
    %v943 = vunpack.c.l.b16 %v219
    %v944 = vunpack.c.l.b16 %v220
    %v945 = vunpack.c.l.b16 %v221
    %v946 = vunpack.c.l.b16 %v222
    %v947 = vunpack.c.l.b16 %v223
    %v948 = vunpack.c.l.b16 %v224
    %v949 = vunpack.c.l.b16 %v225
    %v950 = vunpack.c.l.b16 %v226
    %v951 = vunpack.c.l.b16 %v227
    %v952 = vunpack.c.l.b16 %v228
    %v953 = vunpack.c.l.b16 %v229
    %v954 = vunpack.c.l.b16 %v230
    %v955 = vunpack.c.l.b16 %v231
    %v956 = vunpack.c.l.b16 %v232
    %v957 = vunpack.c.l.b16 %v233
    %v958 = vunpack.c.l.b16 %v234
    %v959 = vunpack.c.l.b16 %v235
    %v960 = vunpack.c.l.b16 %v236
    %v961 = vunpack.c.l.b16 %v237
    %v962 = vunpack.c.l.b16 %v238
    %v963 = vunpack.c.l.b16 %v239
    %v964 = vunpack.c.l.b16 %v240
    %v965 = vunpack.c.l.b16 %v241
    %v966 = vunpack.c.l.b16 %v242
    %v967 = vunpack.c.l.b16 %v243
    %v968 = vunpack.c.l.b16 %v244
    %v969 = vunpack.c.l.b16 %v245
    %v970 = vunpack.c.l.b16 %v246
    %v971 = vunpack.c.l.b16 %v247
    %v972 = vunpack.c.l.b16 %v248
    %v973 = vunpack.c.l.b16 %v249
    %v974 = vunpack.c.l.b16 %v250
    %v975 = vunpack.c.l.b16 %v251
    %v976 = vunpack.c.l.b16 %v252
    %v977 = vunpack.c.l.b16 %v253
    %v978 = vunpack.c.l.b16 %v254
    %v979 = vunpack.c.l.b16 %v255
    %v980 = vunpack.c.l.b16 %v256
    %v981 = vunpack.c.l.b16 %v257
    %v982 = vunpack.c.l.b16 %v258
    %v983 = vunpack.c.l.b16 %v259
    %v984 = vunpack.c.l.b16 %v260
    %v985 = vunpack.c.l.b16 %v261
    %v986 = vunpack.c.l.b16 %v262
    %v987 = vunpack.c.l.b16 %v263
    %v988 = vunpack.c.l.b16 %v264
    %v989 = vunpack.c.l.b16 %v265
    %v990 = vunpack.c.l.b16 %v266
    %v991 = vunpack.c.l.b16 %v267
    %v992 = vunpack.c.l.b16 %v268
    %v993 = vunpack.c.l.b16 %v269
    %v994 = vunpack.c.l.b16 %v270
    %v995 = vunpack.c.l.b16 %v271
    %v996 = vpack.c.b16 %v917, %v916
    %v997 = vpack.c.b16 %v919, %v918
    %v998 = vpack.c.b16 %v921, %v920
    %v999 = vpack.c.b16 %v923, %v922
    %v1000 = vpack.c.b16 %v925, %v924
    %v1001 = vpack.c.b16 %v927, %v926
    %v1002 = vpack.c.b16 %v929, %v928
    %v1003 = vpack.c.b16 %v931, %v930
    %v1004 = vpack.c.b16 %v933, %v932
    %v1005 = vpack.c.b16 %v935, %v934
    %v1006 = vpack.c.b16 %v937, %v936
    %v1007 = vpack.c.b16 %v939, %v938
    %v1008 = vpack.c.b16 %v941, %v940
    %v1009 = vpack.c.b16 %v943, %v942
    %v1010 = vpack.c.b16 %v945, %v944
    %v1011 = vpack.c.b16 %v947, %v946
    %v1012 = vpack.c.b16 %v949, %v948
    %v1013 = vpack.c.b16 %v951, %v950
    %v1014 = vpack.c.b16 %v953, %v952
    %v1015 = vpack.c.b16 %v955, %v954
    %v1016 = vpack.c.b16 %v957, %v956
    %v1017 = vpack.c.b16 %v959, %v958
    %v1018 = vpack.c.b16 %v961, %v960
    %v1019 = vpack.c.b16 %v963, %v962
    %v1020 = vpack.c.b16 %v965, %v964
    %v1021 = vpack.c.b16 %v967, %v966
    %v1022 = vpack.c.b16 %v969, %v968
    %v1023 = vpack.c.b16 %v971, %v970
    %v1024 = vpack.c.b16 %v973, %v972
    %v1025 = vpack.c.b16 %v975, %v974
    %v1026 = vpack.c.b16 %v977, %v976
    %v1027 = vpack.c.b16 %v979, %v978
    %v1028 = vpack.c.b16 %v981, %v980
    %v1029 = vpack.c.b16 %v983, %v982
    %v1030 = vpack.c.b16 %v985, %v984
    %v1031 = vpack.c.b16 %v987, %v986
    %v1032 = vpack.c.b16 %v989, %v988
    %v1033 = vpack.c.b16 %v991, %v990
    %v1034 = vpack.c.b16 %v993, %v992
    %v1035 = vpack.c.b16 %v995, %v994
    %1076 = vmatprep.subr.bf16.mxu0 0
    %1077 = vmatpush1.bf16.msra.mxu0 %v996
    %1078 = vmatprep.subr.bf16.mxu0 0
    %1079 = vmatpush1.bf16.msra.mxu0 %v997
    %1080 = vmatprep.subr.bf16.mxu0 0
    %1081 = vmatpush1.bf16.msra.mxu0 %v998
    %1082 = vmatprep.subr.bf16.mxu0 0
    %1083 = vmatpush1.bf16.msra.mxu0 %v999
    %1084 = vmatprep.subr.bf16.mxu0 0
    %1085 = vmatpush1.bf16.msra.mxu0 %v1000
    %1086 = vmatprep.subr.bf16.mxu0 0
    %1087 = vmatpush1.bf16.msra.mxu0 %v1001
    %1088 = vmatprep.subr.bf16.mxu0 0
    %1089 = vmatpush1.bf16.msra.mxu0 %v1002
    %1090 = vmatprep.subr.bf16.mxu0 0
    %1091 = vmatpush1.bf16.msra.mxu0 %v1003
    %1092 = vmatprep.subr.bf16.mxu0 0
    %1093 = vmatpush1.bf16.msra.mxu0 %v1004
    %1094 = vmatprep.subr.bf16.mxu0 0
    %1095 = vmatpush1.bf16.msra.mxu0 %v1005
    %1096 = vmatprep.subr.bf16.mxu0 0
    %1097 = vmatpush1.bf16.msra.mxu0 %v1006
    %1098 = vmatprep.subr.bf16.mxu0 0
    %1099 = vmatpush1.bf16.msra.mxu0 %v1007
    %1100 = vmatprep.subr.bf16.mxu0 0
    %1101 = vmatpush1.bf16.msra.mxu0 %v1008
    %1102 = vmatprep.subr.bf16.mxu0 0
    %1103 = vmatpush1.bf16.msra.mxu0 %v1009
    %1104 = vmatprep.subr.bf16.mxu0 0
    %1105 = vmatpush1.bf16.msra.mxu0 %v1010
    %1106 = vmatprep.subr.bf16.mxu0 0
    %1107 = vmatpush1.bf16.msra.mxu0 %v1011
    %1108 = vmatprep.mubr.bf16.mxu0 %v617
    %1109 = vmatmul.mubr.bf16.gmra.mrb[0].mxu0 %v616
    %v1110 = vpop.f32.mrb[0].mxu0
    %v1111 = vadd.f32 0.0, %v1110
    %v1112 = vpop.f32.mrb[0].mxu0
    %v1113 = vpop.f32.mrb[0].mxu0
    %v1114 = vadd.f32 0.0, %v1113
    %v1115 = vpop.f32.mrb[0].mxu0
    %1116 = vmatprep.mubr.bf16.mxu0 %v622
    %1117 = vmatmul.mubr.bf16.gmra.mrb[0].mxu0 %v621
    %v1118 = vpop.f32.mrb[0].mxu0
    %v1119 = vadd.f32 0.0, %v1118
    %v1120 = vpop.f32.mrb[0].mxu0
    %v1121 = vpop.f32.mrb[0].mxu0
    %v1122 = vadd.f32 0.0, %v1121
    %v1123 = vpop.f32.mrb[0].mxu0
    %1124 = vmatprep.mubr.bf16.mxu0 %v627
    %1125 = vmatmul.mubr.bf16.gmra.mrb[0].mxu0 %v626
    %v1126 = vpop.f32.mrb[0].mxu0
    %v1127 = vadd.f32 0.0, %v1126
    %v1128 = vpop.f32.mrb[0].mxu0
    %v1129 = vpop.f32.mrb[0].mxu0
    %v1130 = vadd.f32 0.0, %v1129
    %v1131 = vpop.f32.mrb[0].mxu0
    %1132 = vmatprep.mubr.bf16.mxu0 %v632
    %1133 = vmatmul.mubr.bf16.gmra.mrb[0].mxu0 %v631
    %v1134 = vpop.f32.mrb[0].mxu0
    %v1135 = vadd.f32 0.0, %v1134
    %v1136 = vpop.f32.mrb[0].mxu0
    %v1137 = vpop.f32.mrb[0].mxu0
    %v1138 = vadd.f32 0.0, %v1137
    %v1139 = vpop.f32.mrb[0].mxu0
    %1140 = vmatprep.mubr.bf16.mxu0 %v637
    %1141 = vmatmul.mubr.bf16.gmra.mrb[0].mxu0 %v636
    %v1142 = vpop.f32.mrb[0].mxu0
    %v1143 = vadd.f32 0.0, %v1142
    %v1144 = vpop.f32.mrb[0].mxu0
    %v1145 = vpop.f32.mrb[0].mxu0
    %v1146 = vadd.f32 0.0, %v1145
    %v1147 = vpop.f32.mrb[0].mxu0
    %1148 = vmatprep.mubr.bf16.mxu0 %v642
    %1149 = vmatmul.mubr.bf16.gmra.mrb[0].mxu0 %v641
    %v1150 = vpop.f32.mrb[0].mxu0
    %v1151 = vadd.f32 0.0, %v1150
    %v1152 = vpop.f32.mrb[0].mxu0
    %v1153 = vpop.f32.mrb[0].mxu0
    %v1154 = vadd.f32 0.0, %v1153
    %v1155 = vpop.f32.mrb[0].mxu0
    %1156 = vmatprep.mubr.bf16.mxu0 %v647
    %1157 = vmatmul.mubr.bf16.gmra.mrb[0].mxu0 %v646
    %v1158 = vpop.f32.mrb[0].mxu0
    %v1159 = vadd.f32 0.0, %v1158
    %v1160 = vpop.f32.mrb[0].mxu0
    %v1161 = vpop.f32.mrb[0].mxu0
    %v1162 = vadd.f32 0.0, %v1161
    %v1163 = vpop.f32.mrb[0].mxu0
    %1164 = vmatprep.mubr.bf16.mxu0 %v652
    %1165 = vmatmul.mubr.bf16.gmra.mrb[0].mxu0 %v651
    %v1166 = vpop.f32.mrb[0].mxu0
    %v1167 = vadd.f32 0.0, %v1166
    %v1168 = vpop.f32.mrb[0].mxu0
    %v1169 = vpop.f32.mrb[0].mxu0
    %v1170 = vadd.f32 0.0, %v1169
    %v1171 = vpop.f32.mrb[0].mxu0
    %1172 = vmatprep.mubr.bf16.mxu0 %v657
    %1173 = vmatmul.mubr.bf16.gmra.mrb[0].mxu0 %v656
    %v1174 = vpop.f32.mrb[0].mxu0
    %v1175 = vadd.f32 0.0, %v1174
    %v1176 = vpop.f32.mrb[0].mxu0
    %v1177 = vpop.f32.mrb[0].mxu0
    %v1178 = vadd.f32 0.0, %v1177
    %v1179 = vpop.f32.mrb[0].mxu0
    %1180 = vmatprep.mubr.bf16.mxu0 %v662
    %1181 = vmatmul.mubr.bf16.gmra.mrb[0].mxu0 %v661
    %v1182 = vpop.f32.mrb[0].mxu0
    %v1183 = vadd.f32 0.0, %v1182
    %v1184 = vpop.f32.mrb[0].mxu0
    %v1185 = vpop.f32.mrb[0].mxu0
    %v1186 = vadd.f32 0.0, %v1185
    %v1187 = vpop.f32.mrb[0].mxu0
    %1188 = vmatprep.mubr.bf16.mxu0 %v667
    %1189 = vmatmul.mubr.bf16.gmra.mrb[0].mxu0 %v666
    %v1190 = vpop.f32.mrb[0].mxu0
    %v1191 = vadd.f32 0.0, %v1190
    %v1192 = vpop.f32.mrb[0].mxu0
    %v1193 = vpop.f32.mrb[0].mxu0
    %v1194 = vadd.f32 0.0, %v1193
    %v1195 = vpop.f32.mrb[0].mxu0
    %1196 = vmatprep.mubr.bf16.mxu0 %v672
    %1197 = vmatmul.mubr.bf16.gmra.mrb[0].mxu0 %v671
    %v1198 = vpop.f32.mrb[0].mxu0
    %v1199 = vadd.f32 0.0, %v1198
    %v1200 = vpop.f32.mrb[0].mxu0
    %v1201 = vpop.f32.mrb[0].mxu0
    %v1202 = vadd.f32 0.0, %v1201
    %v1203 = vpop.f32.mrb[0].mxu0
    %1204 = vmatprep.mubr.bf16.mxu0 %v677
    %1205 = vmatmul.mubr.bf16.gmra.mrb[0].mxu0 %v676
    %v1206 = vpop.f32.mrb[0].mxu0
    %v1207 = vadd.f32 0.0, %v1206
    %v1208 = vpop.f32.mrb[0].mxu0
    %v1209 = vpop.f32.mrb[0].mxu0
    %v1210 = vadd.f32 0.0, %v1209
    %v1211 = vpop.f32.mrb[0].mxu0
    %1212 = vmatprep.mubr.bf16.mxu0 %v682
    %1213 = vmatmul.mubr.bf16.gmra.mrb[0].mxu0 %v681
    %v1214 = vpop.f32.mrb[0].mxu0
    %v1215 = vadd.f32 0.0, %v1214
    %v1216 = vpop.f32.mrb[0].mxu0
    %v1217 = vpop.f32.mrb[0].mxu0
    %v1218 = vadd.f32 0.0, %v1217
    %v1219 = vpop.f32.mrb[0].mxu0
    %1220 = vmatprep.mubr.bf16.mxu0 %v687
    %1221 = vmatmul.mubr.bf16.gmra.mrb[0].mxu0 %v686
    %v1222 = vpop.f32.mrb[0].mxu0
    %v1223 = vadd.f32 0.0, %v1222
    %v1224 = vpop.f32.mrb[0].mxu0
    %v1225 = vpop.f32.mrb[0].mxu0
    %v1226 = vadd.f32 0.0, %v1225
    %v1227 = vpop.f32.mrb[0].mxu0
    %1228 = vmatprep.mubr.bf16.mxu0 %v692
    %1229 = vmatmul.mubr.bf16.gmra.mrb[0].mxu0 %v691
    %v1230 = vpop.f32.mrb[0].mxu0
    %v1231 = vadd.f32 0.0, %v1230
    %v1232 = vpop.f32.mrb[0].mxu0
    %v1233 = vpop.f32.mrb[0].mxu0
    %v1234 = vadd.f32 0.0, %v1233
    %v1235 = vpop.f32.mrb[0].mxu0
    %1236 = vmatprep.mubr.bf16.mxu0 %v697
    %1237 = vmatmul.mubr.bf16.gmra.mrb[0].mxu0 %v696
    %v1238 = vpop.f32.mrb[0].mxu0
    %v1239 = vadd.f32 0.0, %v1238
    %v1240 = vpop.f32.mrb[0].mxu0
    %v1241 = vpop.f32.mrb[0].mxu0
    %v1242 = vadd.f32 0.0, %v1241
    %v1243 = vpop.f32.mrb[0].mxu0
    %1244 = vmatprep.mubr.bf16.mxu0 %v702
    %1245 = vmatmul.mubr.bf16.gmra.mrb[0].mxu0 %v701
    %v1246 = vpop.f32.mrb[0].mxu0
    %v1247 = vadd.f32 0.0, %v1246
    %v1248 = vpop.f32.mrb[0].mxu0
    %v1249 = vpop.f32.mrb[0].mxu0
    %v1250 = vadd.f32 0.0, %v1249
    %v1251 = vpop.f32.mrb[0].mxu0
    %1252 = vmatprep.mubr.bf16.mxu0 %v707
    %1253 = vmatmul.mubr.bf16.gmra.mrb[0].mxu0 %v706
    %v1254 = vpop.f32.mrb[0].mxu0
    %v1255 = vadd.f32 0.0, %v1254
    %v1256 = vpop.f32.mrb[0].mxu0
    %v1257 = vpop.f32.mrb[0].mxu0
    %v1258 = vadd.f32 0.0, %v1257
    %v1259 = vpop.f32.mrb[0].mxu0
    %1260 = vmatprep.mubr.bf16.mxu0 %v712
    %1261 = vmatmul.mubr.bf16.gmra.mrb[0].mxu0 %v711
    %v1262 = vpop.f32.mrb[0].mxu0
    %v1263 = vadd.f32 0.0, %v1262
    %v1264 = vpop.f32.mrb[0].mxu0
    %v1265 = vpop.f32.mrb[0].mxu0
    %v1266 = vadd.f32 0.0, %v1265
    %v1267 = vpop.f32.mrb[0].mxu0
    %1268 = vmatprep.mubr.bf16.mxu0 %v717
    %1269 = vmatmul.mubr.bf16.gmra.mrb[0].mxu0 %v716
    %v1270 = vpop.f32.mrb[0].mxu0
    %v1271 = vadd.f32 0.0, %v1270
    %v1272 = vpop.f32.mrb[0].mxu0
    %v1273 = vpop.f32.mrb[0].mxu0
    %v1274 = vadd.f32 0.0, %v1273
    %v1275 = vpop.f32.mrb[0].mxu0
    %1276 = vmatprep.mubr.bf16.mxu0 %v722
    %1277 = vmatmul.mubr.bf16.gmra.mrb[0].mxu0 %v721
    %v1278 = vpop.f32.mrb[0].mxu0
    %v1279 = vadd.f32 0.0, %v1278
    %v1280 = vpop.f32.mrb[0].mxu0
    %v1281 = vpop.f32.mrb[0].mxu0
    %v1282 = vpop.f32.mrb[0].mxu0
    %1283 = vdwg.mxu0
    %1284 = vmatprep.subr.bf16.mxu0 0
    %1285 = vmatpush1.bf16.msra.mxu0 %v1012
    %1286 = vmatprep.subr.bf16.mxu0 0
    %1287 = vmatpush1.bf16.msra.mxu0 %v1013
    %1288 = vmatprep.subr.bf16.mxu0 0
    %1289 = vmatpush1.bf16.msra.mxu0 %v1014
    %1290 = vmatprep.subr.bf16.mxu0 0
    %1291 = vmatpush1.bf16.msra.mxu0 %v1015
    %1292 = vmatprep.subr.bf16.mxu0 0
    %1293 = vmatpush1.bf16.msra.mxu0 %v1016
    %1294 = vmatprep.subr.bf16.mxu0 0
    %1295 = vmatpush1.bf16.msra.mxu0 %v1017
    %1296 = vmatprep.subr.bf16.mxu0 0
    %1297 = vmatpush1.bf16.msra.mxu0 %v1018
    %1298 = vmatprep.subr.bf16.mxu0 0
    %1299 = vmatpush1.bf16.msra.mxu0 %v1019
    %1300 = vmatprep.subr.bf16.mxu0 0
    %1301 = vmatpush1.bf16.msra.mxu0 %v1020
    %1302 = vmatprep.subr.bf16.mxu0 0
    %1303 = vmatpush1.bf16.msra.mxu0 %v1021
    %1304 = vmatprep.subr.bf16.mxu0 0
    %1305 = vmatpush1.bf16.msra.mxu0 %v1022
    %1306 = vmatprep.subr.bf16.mxu0 0
    %1307 = vmatpush1.bf16.msra.mxu0 %v1023
    %1308 = vmatprep.subr.bf16.mxu0 0
    %1309 = vmatpush1.bf16.msra.mxu0 %v1024
    %1310 = vmatprep.subr.bf16.mxu0 0
    %1311 = vmatpush1.bf16.msra.mxu0 %v1025
    %1312 = vmatprep.subr.bf16.mxu0 0
    %1313 = vmatpush1.bf16.msra.mxu0 %v1026
    %1314 = vmatprep.subr.bf16.mxu0 0
    %1315 = vmatpush1.bf16.msra.mxu0 %v1027
    %1316 = vmatprep.mubr.bf16.mxu0 %v619
    %1317 = vmatmul.mubr.bf16.gmra.mrb[0].mxu0 %v618
    %v1318 = vpop.f32.mrb[0].mxu0
    %v1319 = vadd.f32 %v1111, %v1318
    %v1320 = vpop.f32.mrb[0].mxu0
    %v1321 = vpop.f32.mrb[0].mxu0
    %v1322 = vadd.f32 %v1114, %v1321
    %v1323 = vpop.f32.mrb[0].mxu0
    %1324 = vmatprep.mubr.bf16.mxu0 %v624
    %1325 = vmatmul.mubr.bf16.gmra.mrb[0].mxu0 %v623
    %v1326 = vpop.f32.mrb[0].mxu0
    %v1327 = vadd.f32 %v1119, %v1326
    %v1328 = vpop.f32.mrb[0].mxu0
    %v1329 = vpop.f32.mrb[0].mxu0
    %v1330 = vadd.f32 %v1122, %v1329
    %v1331 = vpop.f32.mrb[0].mxu0
    %1332 = vmatprep.mubr.bf16.mxu0 %v629
    %1333 = vmatmul.mubr.bf16.gmra.mrb[0].mxu0 %v628
    %v1334 = vpop.f32.mrb[0].mxu0
    %v1335 = vadd.f32 %v1127, %v1334
    %v1336 = vpop.f32.mrb[0].mxu0
    %v1337 = vpop.f32.mrb[0].mxu0
    %v1338 = vadd.f32 %v1130, %v1337
    %v1339 = vpop.f32.mrb[0].mxu0
    %1340 = vmatprep.mubr.bf16.mxu0 %v634
    %1341 = vmatmul.mubr.bf16.gmra.mrb[0].mxu0 %v633
    %v1342 = vpop.f32.mrb[0].mxu0
    %v1343 = vadd.f32 %v1135, %v1342
    %v1344 = vpop.f32.mrb[0].mxu0
    %v1345 = vpop.f32.mrb[0].mxu0
    %v1346 = vadd.f32 %v1138, %v1345
    %v1347 = vpop.f32.mrb[0].mxu0
    %1348 = vmatprep.mubr.bf16.mxu0 %v639
    %1349 = vmatmul.mubr.bf16.gmra.mrb[0].mxu0 %v638
    %v1350 = vpop.f32.mrb[0].mxu0
    %v1351 = vadd.f32 %v1143, %v1350
    %v1352 = vpop.f32.mrb[0].mxu0
    %v1353 = vpop.f32.mrb[0].mxu0
    %v1354 = vadd.f32 %v1146, %v1353
    %v1355 = vpop.f32.mrb[0].mxu0
    %1356 = vmatprep.mubr.bf16.mxu0 %v644
    %1357 = vmatmul.mubr.bf16.gmra.mrb[0].mxu0 %v643
    %v1358 = vpop.f32.mrb[0].mxu0
    %v1359 = vadd.f32 %v1151, %v1358
    %v1360 = vpop.f32.mrb[0].mxu0
    %v1361 = vpop.f32.mrb[0].mxu0
    %v1362 = vadd.f32 %v1154, %v1361
    %v1363 = vpop.f32.mrb[0].mxu0
    %1364 = vmatprep.mubr.bf16.mxu0 %v649
    %1365 = vmatmul.mubr.bf16.gmra.mrb[0].mxu0 %v648
    %v1366 = vpop.f32.mrb[0].mxu0
    %v1367 = vadd.f32 %v1159, %v1366
    %v1368 = vpop.f32.mrb[0].mxu0
    %v1369 = vpop.f32.mrb[0].mxu0
    %v1370 = vadd.f32 %v1162, %v1369
    %v1371 = vpop.f32.mrb[0].mxu0
    %1372 = vmatprep.mubr.bf16.mxu0 %v654
    %1373 = vmatmul.mubr.bf16.gmra.mrb[0].mxu0 %v653
    %v1374 = vpop.f32.mrb[0].mxu0
    %v1375 = vadd.f32 %v1167, %v1374
    %v1376 = vpop.f32.mrb[0].mxu0
    %v1377 = vpop.f32.mrb[0].mxu0
    %v1378 = vadd.f32 %v1170, %v1377
    %v1379 = vpop.f32.mrb[0].mxu0
    %1380 = vmatprep.mubr.bf16.mxu0 %v659
    %1381 = vmatmul.mubr.bf16.gmra.mrb[0].mxu0 %v658
    %v1382 = vpop.f32.mrb[0].mxu0
    %v1383 = vadd.f32 %v1175, %v1382
    %v1384 = vpop.f32.mrb[0].mxu0
    %v1385 = vpop.f32.mrb[0].mxu0
    %v1386 = vadd.f32 %v1178, %v1385
    %v1387 = vpop.f32.mrb[0].mxu0
    %1388 = vmatprep.mubr.bf16.mxu0 %v664
    %1389 = vmatmul.mubr.bf16.gmra.mrb[0].mxu0 %v663
    %v1390 = vpop.f32.mrb[0].mxu0
    %v1391 = vadd.f32 %v1183, %v1390
    %v1392 = vpop.f32.mrb[0].mxu0
    %v1393 = vpop.f32.mrb[0].mxu0
    %v1394 = vadd.f32 %v1186, %v1393
    %v1395 = vpop.f32.mrb[0].mxu0
    %1396 = vmatprep.mubr.bf16.mxu0 %v669
    %1397 = vmatmul.mubr.bf16.gmra.mrb[0].mxu0 %v668
    %v1398 = vpop.f32.mrb[0].mxu0
    %v1399 = vadd.f32 %v1191, %v1398
    %v1400 = vpop.f32.mrb[0].mxu0
    %v1401 = vpop.f32.mrb[0].mxu0
    %v1402 = vadd.f32 %v1194, %v1401
    %v1403 = vpop.f32.mrb[0].mxu0
    %1404 = vmatprep.mubr.bf16.mxu0 %v674
    %1405 = vmatmul.mubr.bf16.gmra.mrb[0].mxu0 %v673
    %v1406 = vpop.f32.mrb[0].mxu0
    %v1407 = vadd.f32 %v1199, %v1406
    %v1408 = vpop.f32.mrb[0].mxu0
    %v1409 = vpop.f32.mrb[0].mxu0
    %v1410 = vadd.f32 %v1202, %v1409
    %v1411 = vpop.f32.mrb[0].mxu0
    %1412 = vmatprep.mubr.bf16.mxu0 %v679
    %1413 = vmatmul.mubr.bf16.gmra.mrb[0].mxu0 %v678
    %v1414 = vpop.f32.mrb[0].mxu0
    %v1415 = vadd.f32 %v1207, %v1414
    %v1416 = vpop.f32.mrb[0].mxu0
    %v1417 = vpop.f32.mrb[0].mxu0
    %v1418 = vadd.f32 %v1210, %v1417
    %v1419 = vpop.f32.mrb[0].mxu0
    %1420 = vmatprep.mubr.bf16.mxu0 %v684
    %1421 = vmatmul.mubr.bf16.gmra.mrb[0].mxu0 %v683
    %v1422 = vpop.f32.mrb[0].mxu0
    %v1423 = vadd.f32 %v1215, %v1422
    %v1424 = vpop.f32.mrb[0].mxu0
    %v1425 = vpop.f32.mrb[0].mxu0
    %v1426 = vadd.f32 %v1218, %v1425
    %v1427 = vpop.f32.mrb[0].mxu0
    %1428 = vmatprep.mubr.bf16.mxu0 %v689
    %1429 = vmatmul.mubr.bf16.gmra.mrb[0].mxu0 %v688
    %v1430 = vpop.f32.mrb[0].mxu0
    %v1431 = vadd.f32 %v1223, %v1430
    %v1432 = vpop.f32.mrb[0].mxu0
    %v1433 = vpop.f32.mrb[0].mxu0
    %v1434 = vadd.f32 %v1226, %v1433
    %v1435 = vpop.f32.mrb[0].mxu0
    %1436 = vmatprep.mubr.bf16.mxu0 %v694
    %1437 = vmatmul.mubr.bf16.gmra.mrb[0].mxu0 %v693
    %v1438 = vpop.f32.mrb[0].mxu0
    %v1439 = vadd.f32 %v1231, %v1438
    %v1440 = vpop.f32.mrb[0].mxu0
    %v1441 = vpop.f32.mrb[0].mxu0
    %v1442 = vadd.f32 %v1234, %v1441
    %v1443 = vpop.f32.mrb[0].mxu0
    %1444 = vmatprep.mubr.bf16.mxu0 %v699
    %1445 = vmatmul.mubr.bf16.gmra.mrb[0].mxu0 %v698
    %v1446 = vpop.f32.mrb[0].mxu0
    %v1447 = vadd.f32 %v1239, %v1446
    %v1448 = vpop.f32.mrb[0].mxu0
    %v1449 = vpop.f32.mrb[0].mxu0
    %v1450 = vadd.f32 %v1242, %v1449
    %v1451 = vpop.f32.mrb[0].mxu0
    %1452 = vmatprep.mubr.bf16.mxu0 %v704
    %1453 = vmatmul.mubr.bf16.gmra.mrb[0].mxu0 %v703
    %v1454 = vpop.f32.mrb[0].mxu0
    %v1455 = vadd.f32 %v1247, %v1454
    %v1456 = vpop.f32.mrb[0].mxu0
    %v1457 = vpop.f32.mrb[0].mxu0
    %v1458 = vadd.f32 %v1250, %v1457
    %v1459 = vpop.f32.mrb[0].mxu0
    %1460 = vmatprep.mubr.bf16.mxu0 %v709
    %1461 = vmatmul.mubr.bf16.gmra.mrb[0].mxu0 %v708
    %v1462 = vpop.f32.mrb[0].mxu0
    %v1463 = vadd.f32 %v1255, %v1462
    %v1464 = vpop.f32.mrb[0].mxu0
    %v1465 = vpop.f32.mrb[0].mxu0
    %v1466 = vadd.f32 %v1258, %v1465
    %v1467 = vpop.f32.mrb[0].mxu0
    %1468 = vmatprep.mubr.bf16.mxu0 %v714
    %1469 = vmatmul.mubr.bf16.gmra.mrb[0].mxu0 %v713
    %v1470 = vpop.f32.mrb[0].mxu0
    %v1471 = vadd.f32 %v1263, %v1470
    %v1472 = vpop.f32.mrb[0].mxu0
    %v1473 = vpop.f32.mrb[0].mxu0
    %v1474 = vadd.f32 %v1266, %v1473
    %v1475 = vpop.f32.mrb[0].mxu0
    %1476 = vmatprep.mubr.bf16.mxu0 %v719
    %1477 = vmatmul.mubr.bf16.gmra.mrb[0].mxu0 %v718
    %v1478 = vpop.f32.mrb[0].mxu0
    %v1479 = vadd.f32 %v1271, %v1478
    %v1480 = vpop.f32.mrb[0].mxu0
    %v1481 = vpop.f32.mrb[0].mxu0
    %v1482 = vadd.f32 %v1274, %v1481
    %v1483 = vpop.f32.mrb[0].mxu0
    %1484 = vmatprep.mubr.bf16.mxu0 %v724
    %1485 = vmatmul.mubr.bf16.gmra.mrb[0].mxu0 %v723
    %v1486 = vpop.f32.mrb[0].mxu0
    %v1487 = vadd.f32 %v1279, %v1486
    %v1488 = vpop.f32.mrb[0].mxu0
    %v1489 = vpop.f32.mrb[0].mxu0
    %v1490 = vpop.f32.mrb[0].mxu0
    %1491 = vdwg.mxu0
    %1492 = vmatprep.subr.bf16.mxu0 0
    %1493 = vmatpush1.bf16.msra.mxu0 %v1028
    %1494 = vmatprep.subr.bf16.mxu0 0
    %1495 = vmatpush1.bf16.msra.mxu0 %v1029
    %1496 = vmatprep.subr.bf16.mxu0 0
    %1497 = vmatpush1.bf16.msra.mxu0 %v1030
    %1498 = vmatprep.subr.bf16.mxu0 0
    %1499 = vmatpush1.bf16.msra.mxu0 %v1031
    %1500 = vmatprep.subr.bf16.mxu0 0
    %1501 = vmatpush1.bf16.msra.mxu0 %v1032
    %1502 = vmatprep.subr.bf16.mxu0 0
    %1503 = vmatpush1.bf16.msra.mxu0 %v1033
    %1504 = vmatprep.subr.bf16.mxu0 0
    %1505 = vmatpush1.bf16.msra.mxu0 %v1034
    %1506 = vmatprep.subr.bf16.mxu0 0
    %1507 = vmatpush1.bf16.msra.mxu0 %v1035
    %1508 = vmatprep.subr.bf16.mxu0 0
    %1509 = vmatpush1.bf16.msra.mxu0 0
    %1510 = vmatprep.subr.bf16.mxu0 0
    %1511 = vmatpush1.bf16.msra.mxu0 0
    %1512 = vmatprep.subr.bf16.mxu0 0
    %1513 = vmatpush1.bf16.msra.mxu0 0
    %1514 = vmatprep.subr.bf16.mxu0 0
    %1515 = vmatpush1.bf16.msra.mxu0 0
    %1516 = vmatprep.subr.bf16.mxu0 0
    %1517 = vmatpush1.bf16.msra.mxu0 0
    %1518 = vmatprep.subr.bf16.mxu0 0
    %1519 = vmatpush1.bf16.msra.mxu0 0
    %1520 = vmatprep.subr.bf16.mxu0 0
    %1521 = vmatpush1.bf16.msra.mxu0 0
    %1522 = vmatprep.subr.bf16.mxu0 0
    %1523 = vmatpush1.bf16.msra.mxu0 0
    %1524 = vmatprep.mubr.bf16.mxu0 0
    %1525 = vmatmul.mubr.bf16.gmra.mrb[0].mxu0 %v620
    %v1526 = vpop.f32.mrb[0].mxu0
    %v1527 = vadd.f32 %v1319, %v1526
    %v1528 = vpop.f32.mrb[0].mxu0
    %v1529 = vpop.f32.mrb[0].mxu0
    %v1530 = vadd.f32 %v1322, %v1529
    %v1531 = vpop.f32.mrb[0].mxu0
    %1532 = vmatprep.mubr.bf16.mxu0 0
    %1533 = vmatmul.mubr.bf16.gmra.mrb[0].mxu0 %v625
    %v1534 = vpop.f32.mrb[0].mxu0
    %v1535 = vadd.f32 %v1327, %v1534
    %v1536 = vpop.f32.mrb[0].mxu0
    %v1537 = vpop.f32.mrb[0].mxu0
    %v1538 = vadd.f32 %v1330, %v1537
    %v1539 = vpop.f32.mrb[0].mxu0
    %1540 = vmatprep.mubr.bf16.mxu0 0
    %1541 = vmatmul.mubr.bf16.gmra.mrb[0].mxu0 %v630
    %v1542 = vpop.f32.mrb[0].mxu0
    %v1543 = vadd.f32 %v1335, %v1542
    %v1544 = vpop.f32.mrb[0].mxu0
    %v1545 = vpop.f32.mrb[0].mxu0
    %v1546 = vadd.f32 %v1338, %v1545
    %v1547 = vpop.f32.mrb[0].mxu0
    %1548 = vmatprep.mubr.bf16.mxu0 0
    %1549 = vmatmul.mubr.bf16.gmra.mrb[0].mxu0 %v635
    %v1550 = vpop.f32.mrb[0].mxu0
    %v1551 = vadd.f32 %v1343, %v1550
    %v1552 = vpop.f32.mrb[0].mxu0
    %v1553 = vpop.f32.mrb[0].mxu0
    %v1554 = vadd.f32 %v1346, %v1553
    %v1555 = vpop.f32.mrb[0].mxu0
    %1556 = vmatprep.mubr.bf16.mxu0 0
    %1557 = vmatmul.mubr.bf16.gmra.mrb[0].mxu0 %v640
    %v1558 = vpop.f32.mrb[0].mxu0
    %v1559 = vadd.f32 %v1351, %v1558
    %v1560 = vpop.f32.mrb[0].mxu0
    %v1561 = vpop.f32.mrb[0].mxu0
    %v1562 = vadd.f32 %v1354, %v1561
    %v1563 = vpop.f32.mrb[0].mxu0
    %1564 = vmatprep.mubr.bf16.mxu0 0
    %1565 = vmatmul.mubr.bf16.gmra.mrb[0].mxu0 %v645
    %v1566 = vpop.f32.mrb[0].mxu0
    %v1567 = vadd.f32 %v1359, %v1566
    %v1568 = vpop.f32.mrb[0].mxu0
    %v1569 = vpop.f32.mrb[0].mxu0
    %v1570 = vadd.f32 %v1362, %v1569
    %v1571 = vpop.f32.mrb[0].mxu0
    %1572 = vmatprep.mubr.bf16.mxu0 0
    %1573 = vmatmul.mubr.bf16.gmra.mrb[0].mxu0 %v650
    %v1574 = vpop.f32.mrb[0].mxu0
    %v1575 = vadd.f32 %v1367, %v1574
    %v1576 = vpop.f32.mrb[0].mxu0
    %v1577 = vpop.f32.mrb[0].mxu0
    %v1578 = vadd.f32 %v1370, %v1577
    %v1579 = vpop.f32.mrb[0].mxu0
    %1580 = vmatprep.mubr.bf16.mxu0 0
    %1581 = vmatmul.mubr.bf16.gmra.mrb[0].mxu0 %v655
    %v1582 = vpop.f32.mrb[0].mxu0
    %v1583 = vadd.f32 %v1375, %v1582
    %v1584 = vpop.f32.mrb[0].mxu0
    %v1585 = vpop.f32.mrb[0].mxu0
    %v1586 = vadd.f32 %v1378, %v1585
    %v1587 = vpop.f32.mrb[0].mxu0
    %1588 = vmatprep.mubr.bf16.mxu0 0
    %1589 = vmatmul.mubr.bf16.gmra.mrb[0].mxu0 %v660
    %v1590 = vpop.f32.mrb[0].mxu0
    %v1591 = vadd.f32 %v1383, %v1590
    %v1592 = vpop.f32.mrb[0].mxu0
    %v1593 = vpop.f32.mrb[0].mxu0
    %v1594 = vadd.f32 %v1386, %v1593
    %v1595 = vpop.f32.mrb[0].mxu0
    %1596 = vmatprep.mubr.bf16.mxu0 0
    %1597 = vmatmul.mubr.bf16.gmra.mrb[0].mxu0 %v665
    %v1598 = vpop.f32.mrb[0].mxu0
    %v1599 = vadd.f32 %v1391, %v1598
    %v1600 = vpop.f32.mrb[0].mxu0
    %v1601 = vpop.f32.mrb[0].mxu0
    %v1602 = vadd.f32 %v1394, %v1601
    %v1603 = vpop.f32.mrb[0].mxu0
    %1604 = vmatprep.mubr.bf16.mxu0 0
    %1605 = vmatmul.mubr.bf16.gmra.mrb[0].mxu0 %v670
    %v1606 = vpop.f32.mrb[0].mxu0
    %v1607 = vadd.f32 %v1399, %v1606
    %v1608 = vpop.f32.mrb[0].mxu0
    %v1609 = vpop.f32.mrb[0].mxu0
    %v1610 = vadd.f32 %v1402, %v1609
    %v1611 = vpop.f32.mrb[0].mxu0
    %1612 = vmatprep.mubr.bf16.mxu0 0
    %1613 = vmatmul.mubr.bf16.gmra.mrb[0].mxu0 %v675
    %v1614 = vpop.f32.mrb[0].mxu0
    %v1615 = vadd.f32 %v1407, %v1614
    %v1616 = vpop.f32.mrb[0].mxu0
    %v1617 = vpop.f32.mrb[0].mxu0
    %v1618 = vadd.f32 %v1410, %v1617
    %v1619 = vpop.f32.mrb[0].mxu0
    %1620 = vmatprep.mubr.bf16.mxu0 0
    %1621 = vmatmul.mubr.bf16.gmra.mrb[0].mxu0 %v680
    %v1622 = vpop.f32.mrb[0].mxu0
    %v1623 = vadd.f32 %v1415, %v1622
    %v1624 = vpop.f32.mrb[0].mxu0
    %v1625 = vpop.f32.mrb[0].mxu0
    %v1626 = vadd.f32 %v1418, %v1625
    %v1627 = vpop.f32.mrb[0].mxu0
    %1628 = vmatprep.mubr.bf16.mxu0 0
    %1629 = vmatmul.mubr.bf16.gmra.mrb[0].mxu0 %v685
    %v1630 = vpop.f32.mrb[0].mxu0
    %v1631 = vadd.f32 %v1423, %v1630
    %v1632 = vpop.f32.mrb[0].mxu0
    %v1633 = vpop.f32.mrb[0].mxu0
    %v1634 = vadd.f32 %v1426, %v1633
    %v1635 = vpop.f32.mrb[0].mxu0
    %1636 = vmatprep.mubr.bf16.mxu0 0
    %1637 = vmatmul.mubr.bf16.gmra.mrb[0].mxu0 %v690
    %v1638 = vpop.f32.mrb[0].mxu0
    %v1639 = vadd.f32 %v1431, %v1638
    %v1640 = vpop.f32.mrb[0].mxu0
    %v1641 = vpop.f32.mrb[0].mxu0
    %v1642 = vadd.f32 %v1434, %v1641
    %v1643 = vpop.f32.mrb[0].mxu0
    %1644 = vmatprep.mubr.bf16.mxu0 0
    %1645 = vmatmul.mubr.bf16.gmra.mrb[0].mxu0 %v695
    %v1646 = vpop.f32.mrb[0].mxu0
    %v1647 = vadd.f32 %v1439, %v1646
    %v1648 = vpop.f32.mrb[0].mxu0
    %v1649 = vpop.f32.mrb[0].mxu0
    %v1650 = vadd.f32 %v1442, %v1649
    %v1651 = vpop.f32.mrb[0].mxu0
    %1652 = vmatprep.mubr.bf16.mxu0 0
    %1653 = vmatmul.mubr.bf16.gmra.mrb[0].mxu0 %v700
    %v1654 = vpop.f32.mrb[0].mxu0
    %v1655 = vadd.f32 %v1447, %v1654
    %v1656 = vpop.f32.mrb[0].mxu0
    %v1657 = vpop.f32.mrb[0].mxu0
    %v1658 = vadd.f32 %v1450, %v1657
    %v1659 = vpop.f32.mrb[0].mxu0
    %1660 = vmatprep.mubr.bf16.mxu0 0
    %1661 = vmatmul.mubr.bf16.gmra.mrb[0].mxu0 %v705
    %v1662 = vpop.f32.mrb[0].mxu0
    %v1663 = vadd.f32 %v1455, %v1662
    %v1664 = vpop.f32.mrb[0].mxu0
    %v1665 = vpop.f32.mrb[0].mxu0
    %v1666 = vadd.f32 %v1458, %v1665
    %v1667 = vpop.f32.mrb[0].mxu0
    %1668 = vmatprep.mubr.bf16.mxu0 0
    %1669 = vmatmul.mubr.bf16.gmra.mrb[0].mxu0 %v710
    %v1670 = vpop.f32.mrb[0].mxu0
    %v1671 = vadd.f32 %v1463, %v1670
    %v1672 = vpop.f32.mrb[0].mxu0
    %v1673 = vpop.f32.mrb[0].mxu0
    %v1674 = vadd.f32 %v1466, %v1673
    %v1675 = vpop.f32.mrb[0].mxu0
    %1676 = vmatprep.mubr.bf16.mxu0 0
    %1677 = vmatmul.mubr.bf16.gmra.mrb[0].mxu0 %v715
    %v1678 = vpop.f32.mrb[0].mxu0
    %v1679 = vadd.f32 %v1471, %v1678
    %v1680 = vpop.f32.mrb[0].mxu0
    %v1681 = vpop.f32.mrb[0].mxu0
    %v1682 = vadd.f32 %v1474, %v1681
    %v1683 = vpop.f32.mrb[0].mxu0
    %1684 = vmatprep.mubr.bf16.mxu0 0
    %1685 = vmatmul.mubr.bf16.gmra.mrb[0].mxu0 %v720
    %v1686 = vpop.f32.mrb[0].mxu0
    %v1687 = vadd.f32 %v1479, %v1686
    %v1688 = vpop.f32.mrb[0].mxu0
    %v1689 = vpop.f32.mrb[0].mxu0
    %v1690 = vadd.f32 %v1482, %v1689
    %v1691 = vpop.f32.mrb[0].mxu0
    %1692 = vmatprep.mubr.bf16.mxu0 0
    %1693 = vmatmul.mubr.bf16.gmra.mrb[0].mxu0 %v725
    %v1694 = vpop.f32.mrb[0].mxu0
    %v1695 = vadd.f32 %v1487, %v1694
    %v1696 = vpop.f32.mrb[0].mxu0
    %v1697 = vpop.f32.mrb[0].mxu0
    %v1698 = vpop.f32.mrb[0].mxu0
    %1699 = vdwg.mxu0
    %v1700 = vld [vmem:[#allocation7] sm:$0xff]
    %v1701 = vld [vmem:[#allocation7 + $0x8] sm:$0xff]
    %v1702 = vld [vmem:[#allocation7 + $0x10] sm:$0xff]
    %v1703 = vld [vmem:[#allocation7 + $0x18] sm:$0xff]
    %v1704 = vld [vmem:[#allocation7 + $0x20] sm:$0xff]
    %v1705 = vld [vmem:[#allocation7 + $0x28] sm:$0xff]
    %v1706 = vld [vmem:[#allocation7 + $0x30] sm:$0xff]
    %v1707 = vld [vmem:[#allocation7 + $0x38] sm:$0xff]
    %v1708 = vld [vmem:[#allocation7 + $0x40] sm:$0xff]
    %v1709 = vld [vmem:[#allocation7 + $0x48] sm:$0xff]
    %v1710 = vld [vmem:[#allocation7 + $0x50] sm:$0xff]
    %v1711 = vld [vmem:[#allocation7 + $0x58] sm:$0xff]
    %v1712 = vld [vmem:[#allocation7 + $0x60] sm:$0xff]
    %v1713 = vld [vmem:[#allocation7 + $0x68] sm:$0xff]
    %v1714 = vld [vmem:[#allocation7 + $0x70] sm:$0xff]
    %v1715 = vld [vmem:[#allocation7 + $0x78] sm:$0xff]
    %v1716 = vld [vmem:[%s3] sm:$0x1]
    %v1717 = vld [vmem:[%s4] sm:$0x1]
    %1718 = vmatprep.subr.mxu0 0.0
    %1719 = vmatpush1.msra.mxu0 %v1700
    %1720 = vmatprep.subr.mxu0 0.0
    %1721 = vmatpush1.msra.mxu0 %v1701
    %1722 = vmatprep.subr.mxu0 0.0
    %1723 = vmatpush1.msra.mxu0 %v1702
    %1724 = vmatprep.subr.mxu0 0.0
    %1725 = vmatpush1.msra.mxu0 %v1703
    %1726 = vmatprep.subr.mxu0 0.0
    %1727 = vmatpush1.msra.mxu0 %v1704
    %1728 = vmatprep.subr.mxu0 0.0
    %1729 = vmatpush1.msra.mxu0 %v1705
    %1730 = vmatprep.subr.mxu0 0.0
    %1731 = vmatpush1.msra.mxu0 %v1706
    %1732 = vmatprep.subr.mxu0 0.0
    %1733 = vmatpush1.msra.mxu0 %v1707
    %1734 = vmatprep.subr.mxu0 0.0
    %1735 = vmatpush1.msra.mxu0 %v1708
    %1736 = vmatprep.subr.mxu0 0.0
    %1737 = vmatpush1.msra.mxu0 %v1709
    %1738 = vmatprep.subr.mxu0 0.0
    %1739 = vmatpush1.msra.mxu0 %v1710
    %1740 = vmatprep.subr.mxu0 0.0
    %1741 = vmatpush1.msra.mxu0 %v1711
    %1742 = vmatprep.subr.mxu0 0.0
    %1743 = vmatpush1.msra.mxu0 %v1712
    %1744 = vmatprep.subr.mxu0 0.0
    %1745 = vmatpush1.msra.mxu0 %v1713
    %1746 = vmatprep.subr.mxu0 0.0
    %1747 = vmatpush1.msra.mxu0 %v1714
    %1748 = vmatprep.subr.mxu0 0.0
    %1749 = vmatpush1.msra.mxu0 %v1715
    %1750 = vmatprep.subr.mxu0 0.0
    %1751 = vmatpush1.msra.mxu0 0.0
    %1752 = vmatprep.subr.mxu0 0.0
    %1753 = vmatpush1.msra.mxu0 0.0
    %1754 = vmatprep.subr.mxu0 0.0
    %1755 = vmatpush1.msra.mxu0 0.0
    %1756 = vmatprep.subr.mxu0 0.0
    %1757 = vmatpush1.msra.mxu0 0.0
    %1758 = vmatprep.subr.mxu0 0.0
    %1759 = vmatpush1.msra.mxu0 0.0
    %1760 = vmatprep.subr.mxu0 0.0
    %1761 = vmatpush1.msra.mxu0 0.0
    %1762 = vmatprep.subr.mxu0 0.0
    %1763 = vmatpush1.msra.mxu0 0.0
    %1764 = vmatprep.subr.mxu0 0.0
    %1765 = vmatpush1.msra.mxu0 0.0
    %1766 = vmatprep.subr.mxu0 0.0
    %1767 = vmatpush1.msra.mxu0 0.0
    %1768 = vmatprep.subr.mxu0 0.0
    %1769 = vmatpush1.msra.mxu0 0.0
    %1770 = vmatprep.subr.mxu0 0.0
    %1771 = vmatpush1.msra.mxu0 0.0
    %1772 = vmatprep.subr.mxu0 0.0
    %1773 = vmatpush1.msra.mxu0 0.0
    %1774 = vmatprep.subr.mxu0 0.0
    %1775 = vmatpush1.msra.mxu0 0.0
    %1776 = vmatprep.subr.mxu0 0.0
    %1777 = vmatpush1.msra.mxu0 0.0
    %1778 = vmatprep.subr.mxu0 0.0
    %1779 = vmatpush1.msra.mxu0 0.0
    %1780 = vmatprep.subr.mxu0 0.0
    %1781 = vmatpush1.msra.mxu0 0.0
    %1782 = vmatprep.mubr.f32.mxu0 0.0
    %1783 = vmatmul.mubr.f32.gmra.mrb[0].mxu0 %v1527
    %v1784 = vpop.f32.mrb[0].mxu0
    %v1785 = vadd.f32 0.0, %v1784
    %v1786 = vpop.f32.mrb[0].mxu0
    %1787 = vmatprep.mubr.f32.mxu0 0.0
    %1788 = vmatmul.mubr.f32.gmra.mrb[0].mxu0 %v1530
    %v1789 = vpop.f32.mrb[0].mxu0
    %v1790 = vadd.f32 0.0, %v1789
    %v1791 = vpop.f32.mrb[0].mxu0
    %1792 = vmatprep.mubr.f32.mxu0 0.0
    %1793 = vmatmul.mubr.f32.gmra.mrb[0].mxu0 %v1535
    %v1794 = vpop.f32.mrb[0].mxu0
    %v1795 = vadd.f32 0.0, %v1794
    %v1796 = vpop.f32.mrb[0].mxu0
    %1797 = vmatprep.mubr.f32.mxu0 0.0
    %1798 = vmatmul.mubr.f32.gmra.mrb[0].mxu0 %v1538
    %v1799 = vpop.f32.mrb[0].mxu0
    %v1800 = vadd.f32 0.0, %v1799
    %v1801 = vpop.f32.mrb[0].mxu0
    %1802 = vmatprep.mubr.f32.mxu0 0.0
    %1803 = vmatmul.mubr.f32.gmra.mrb[0].mxu0 %v1543
    %v1804 = vpop.f32.mrb[0].mxu0
    %v1805 = vadd.f32 0.0, %v1804
    %v1806 = vpop.f32.mrb[0].mxu0
    %1807 = vmatprep.mubr.f32.mxu0 0.0
    %1808 = vmatmul.mubr.f32.gmra.mrb[0].mxu0 %v1546
    %v1809 = vpop.f32.mrb[0].mxu0
    %v1810 = vadd.f32 0.0, %v1809
    %v1811 = vpop.f32.mrb[0].mxu0
    %1812 = vmatprep.mubr.f32.mxu0 0.0
    %1813 = vmatmul.mubr.f32.gmra.mrb[0].mxu0 %v1551
    %v1814 = vpop.f32.mrb[0].mxu0
    %v1815 = vadd.f32 0.0, %v1814
    %v1816 = vpop.f32.mrb[0].mxu0
    %1817 = vmatprep.mubr.f32.mxu0 0.0
    %1818 = vmatmul.mubr.f32.gmra.mrb[0].mxu0 %v1554
    %v1819 = vpop.f32.mrb[0].mxu0
    %v1820 = vadd.f32 0.0, %v1819
    %v1821 = vpop.f32.mrb[0].mxu0
    %1822 = vmatprep.mubr.f32.mxu0 0.0
    %1823 = vmatmul.mubr.f32.gmra.mrb[0].mxu0 %v1559
    %v1824 = vpop.f32.mrb[0].mxu0
    %v1825 = vadd.f32 0.0, %v1824
    %v1826 = vpop.f32.mrb[0].mxu0
    %1827 = vmatprep.mubr.f32.mxu0 0.0
    %1828 = vmatmul.mubr.f32.gmra.mrb[0].mxu0 %v1562
    %v1829 = vpop.f32.mrb[0].mxu0
    %v1830 = vadd.f32 0.0, %v1829
    %v1831 = vpop.f32.mrb[0].mxu0
    %1832 = vmatprep.mubr.f32.mxu0 0.0
    %1833 = vmatmul.mubr.f32.gmra.mrb[0].mxu0 %v1567
    %v1834 = vpop.f32.mrb[0].mxu0
    %v1835 = vadd.f32 0.0, %v1834
    %v1836 = vpop.f32.mrb[0].mxu0
    %1837 = vmatprep.mubr.f32.mxu0 0.0
    %1838 = vmatmul.mubr.f32.gmra.mrb[0].mxu0 %v1570
    %v1839 = vpop.f32.mrb[0].mxu0
    %v1840 = vadd.f32 0.0, %v1839
    %v1841 = vpop.f32.mrb[0].mxu0
    %1842 = vmatprep.mubr.f32.mxu0 0.0
    %1843 = vmatmul.mubr.f32.gmra.mrb[0].mxu0 %v1575
    %v1844 = vpop.f32.mrb[0].mxu0
    %v1845 = vadd.f32 0.0, %v1844
    %v1846 = vpop.f32.mrb[0].mxu0
    %1847 = vmatprep.mubr.f32.mxu0 0.0
    %1848 = vmatmul.mubr.f32.gmra.mrb[0].mxu0 %v1578
    %v1849 = vpop.f32.mrb[0].mxu0
    %v1850 = vadd.f32 0.0, %v1849
    %v1851 = vpop.f32.mrb[0].mxu0
    %1852 = vmatprep.mubr.f32.mxu0 0.0
    %1853 = vmatmul.mubr.f32.gmra.mrb[0].mxu0 %v1583
    %v1854 = vpop.f32.mrb[0].mxu0
    %v1855 = vadd.f32 0.0, %v1854
    %v1856 = vpop.f32.mrb[0].mxu0
    %1857 = vmatprep.mubr.f32.mxu0 0.0
    %1858 = vmatmul.mubr.f32.gmra.mrb[0].mxu0 %v1586
    %v1859 = vpop.f32.mrb[0].mxu0
    %v1860 = vadd.f32 0.0, %v1859
    %v1861 = vpop.f32.mrb[0].mxu0
    %1862 = vmatprep.mubr.f32.mxu0 0.0
    %1863 = vmatmul.mubr.f32.gmra.mrb[0].mxu0 %v1591
    %v1864 = vpop.f32.mrb[0].mxu0
    %v1865 = vadd.f32 0.0, %v1864
    %v1866 = vpop.f32.mrb[0].mxu0
    %1867 = vmatprep.mubr.f32.mxu0 0.0
    %1868 = vmatmul.mubr.f32.gmra.mrb[0].mxu0 %v1594
    %v1869 = vpop.f32.mrb[0].mxu0
    %v1870 = vadd.f32 0.0, %v1869
    %v1871 = vpop.f32.mrb[0].mxu0
    %1872 = vmatprep.mubr.f32.mxu0 0.0
    %1873 = vmatmul.mubr.f32.gmra.mrb[0].mxu0 %v1599
    %v1874 = vpop.f32.mrb[0].mxu0
    %v1875 = vadd.f32 0.0, %v1874
    %v1876 = vpop.f32.mrb[0].mxu0
    %1877 = vmatprep.mubr.f32.mxu0 0.0
    %1878 = vmatmul.mubr.f32.gmra.mrb[0].mxu0 %v1602
    %v1879 = vpop.f32.mrb[0].mxu0
    %v1880 = vadd.f32 0.0, %v1879
    %v1881 = vpop.f32.mrb[0].mxu0
    %1882 = vmatprep.mubr.f32.mxu0 0.0
    %1883 = vmatmul.mubr.f32.gmra.mrb[0].mxu0 %v1607
    %v1884 = vpop.f32.mrb[0].mxu0
    %v1885 = vadd.f32 0.0, %v1884
    %v1886 = vpop.f32.mrb[0].mxu0
    %1887 = vmatprep.mubr.f32.mxu0 0.0
    %1888 = vmatmul.mubr.f32.gmra.mrb[0].mxu0 %v1610
    %v1889 = vpop.f32.mrb[0].mxu0
    %v1890 = vadd.f32 0.0, %v1889
    %v1891 = vpop.f32.mrb[0].mxu0
    %1892 = vmatprep.mubr.f32.mxu0 0.0
    %1893 = vmatmul.mubr.f32.gmra.mrb[0].mxu0 %v1615
    %v1894 = vpop.f32.mrb[0].mxu0
    %v1895 = vadd.f32 0.0, %v1894
    %v1896 = vpop.f32.mrb[0].mxu0
    %1897 = vmatprep.mubr.f32.mxu0 0.0
    %1898 = vmatmul.mubr.f32.gmra.mrb[0].mxu0 %v1618
    %v1899 = vpop.f32.mrb[0].mxu0
    %v1900 = vadd.f32 0.0, %v1899
    %v1901 = vpop.f32.mrb[0].mxu0
    %1902 = vmatprep.mubr.f32.mxu0 0.0
    %1903 = vmatmul.mubr.f32.gmra.mrb[0].mxu0 %v1623
    %v1904 = vpop.f32.mrb[0].mxu0
    %v1905 = vadd.f32 0.0, %v1904
    %v1906 = vpop.f32.mrb[0].mxu0
    %1907 = vmatprep.mubr.f32.mxu0 0.0
    %1908 = vmatmul.mubr.f32.gmra.mrb[0].mxu0 %v1626
    %v1909 = vpop.f32.mrb[0].mxu0
    %v1910 = vadd.f32 0.0, %v1909
    %v1911 = vpop.f32.mrb[0].mxu0
    %1912 = vmatprep.mubr.f32.mxu0 0.0
    %1913 = vmatmul.mubr.f32.gmra.mrb[0].mxu0 %v1631
    %v1914 = vpop.f32.mrb[0].mxu0
    %v1915 = vadd.f32 0.0, %v1914
    %v1916 = vpop.f32.mrb[0].mxu0
    %1917 = vmatprep.mubr.f32.mxu0 0.0
    %1918 = vmatmul.mubr.f32.gmra.mrb[0].mxu0 %v1634
    %v1919 = vpop.f32.mrb[0].mxu0
    %v1920 = vadd.f32 0.0, %v1919
    %v1921 = vpop.f32.mrb[0].mxu0
    %1922 = vmatprep.mubr.f32.mxu0 0.0
    %1923 = vmatmul.mubr.f32.gmra.mrb[0].mxu0 %v1639
    %v1924 = vpop.f32.mrb[0].mxu0
    %v1925 = vadd.f32 0.0, %v1924
    %v1926 = vpop.f32.mrb[0].mxu0
    %1927 = vmatprep.mubr.f32.mxu0 0.0
    %1928 = vmatmul.mubr.f32.gmra.mrb[0].mxu0 %v1642
    %v1929 = vpop.f32.mrb[0].mxu0
    %v1930 = vadd.f32 0.0, %v1929
    %v1931 = vpop.f32.mrb[0].mxu0
    %1932 = vmatprep.mubr.f32.mxu0 0.0
    %1933 = vmatmul.mubr.f32.gmra.mrb[0].mxu0 %v1647
    %v1934 = vpop.f32.mrb[0].mxu0
    %v1935 = vadd.f32 0.0, %v1934
    %v1936 = vpop.f32.mrb[0].mxu0
    %1937 = vmatprep.mubr.f32.mxu0 0.0
    %1938 = vmatmul.mubr.f32.gmra.mrb[0].mxu0 %v1650
    %v1939 = vpop.f32.mrb[0].mxu0
    %v1940 = vadd.f32 0.0, %v1939
    %v1941 = vpop.f32.mrb[0].mxu0
    %1942 = vmatprep.mubr.f32.mxu0 0.0
    %1943 = vmatmul.mubr.f32.gmra.mrb[0].mxu0 %v1655
    %v1944 = vpop.f32.mrb[0].mxu0
    %v1945 = vadd.f32 0.0, %v1944
    %v1946 = vpop.f32.mrb[0].mxu0
    %1947 = vmatprep.mubr.f32.mxu0 0.0
    %1948 = vmatmul.mubr.f32.gmra.mrb[0].mxu0 %v1658
    %v1949 = vpop.f32.mrb[0].mxu0
    %v1950 = vadd.f32 0.0, %v1949
    %v1951 = vpop.f32.mrb[0].mxu0
    %1952 = vmatprep.mubr.f32.mxu0 0.0
    %1953 = vmatmul.mubr.f32.gmra.mrb[0].mxu0 %v1663
    %v1954 = vpop.f32.mrb[0].mxu0
    %v1955 = vadd.f32 0.0, %v1954
    %v1956 = vpop.f32.mrb[0].mxu0
    %1957 = vmatprep.mubr.f32.mxu0 0.0
    %1958 = vmatmul.mubr.f32.gmra.mrb[0].mxu0 %v1666
    %v1959 = vpop.f32.mrb[0].mxu0
    %v1960 = vadd.f32 0.0, %v1959
    %v1961 = vpop.f32.mrb[0].mxu0
    %1962 = vmatprep.mubr.f32.mxu0 0.0
    %1963 = vmatmul.mubr.f32.gmra.mrb[0].mxu0 %v1671
    %v1964 = vpop.f32.mrb[0].mxu0
    %v1965 = vadd.f32 0.0, %v1964
    %v1966 = vpop.f32.mrb[0].mxu0
    %1967 = vmatprep.mubr.f32.mxu0 0.0
    %1968 = vmatmul.mubr.f32.gmra.mrb[0].mxu0 %v1674
    %v1969 = vpop.f32.mrb[0].mxu0
    %v1970 = vadd.f32 0.0, %v1969
    %v1971 = vpop.f32.mrb[0].mxu0
    %1972 = vmatprep.mubr.f32.mxu0 0.0
    %1973 = vmatmul.mubr.f32.gmra.mrb[0].mxu0 %v1679
    %v1974 = vpop.f32.mrb[0].mxu0
    %v1975 = vadd.f32 0.0, %v1974
    %v1976 = vpop.f32.mrb[0].mxu0
    %1977 = vmatprep.mubr.f32.mxu0 0.0
    %1978 = vmatmul.mubr.f32.gmra.mrb[0].mxu0 %v1682
    %v1979 = vpop.f32.mrb[0].mxu0
    %v1980 = vadd.f32 0.0, %v1979
    %v1981 = vpop.f32.mrb[0].mxu0
    %1982 = vmatprep.mubr.f32.mxu0 0.0
    %1983 = vmatmul.mubr.f32.gmra.mrb[0].mxu0 %v1687
    %v1984 = vpop.f32.mrb[0].mxu0
    %v1985 = vadd.f32 0.0, %v1984
    %v1986 = vpop.f32.mrb[0].mxu0
    %1987 = vmatprep.mubr.f32.mxu0 0.0
    %1988 = vmatmul.mubr.f32.gmra.mrb[0].mxu0 %v1690
    %v1989 = vpop.f32.mrb[0].mxu0
    %v1990 = vadd.f32 0.0, %v1989
    %v1991 = vpop.f32.mrb[0].mxu0
    %1992 = vmatprep.mubr.f32.mxu0 0.0
    %1993 = vmatmul.mubr.f32.gmra.mrb[0].mxu0 %v1695
    %v1994 = vpop.f32.mrb[0].mxu0
    %v1995 = vadd.f32 0.0, %v1994
    %v1996 = vpop.f32.mrb[0].mxu0
    %1997 = vdwg.mxu0
    %v1998 = vmul.f32 %v1785, 0.0625
    %v1999 = vmul.f32 %v1790, 0.0625
    %v2000 = vmul.f32 %v1795, 0.0625
    %v2001 = vmul.f32 %v1800, 0.0625
    %v2002 = vmul.f32 %v1805, 0.0625
    %v2003 = vmul.f32 %v1810, 0.0625
    %v2004 = vmul.f32 %v1815, 0.0625
    %v2005 = vmul.f32 %v1820, 0.0625
    %v2006 = vmul.f32 %v1825, 0.0625
    %v2007 = vmul.f32 %v1830, 0.0625
    %v2008 = vmul.f32 %v1835, 0.0625
    %v2009 = vmul.f32 %v1840, 0.0625
    %v2010 = vmul.f32 %v1845, 0.0625
    %v2011 = vmul.f32 %v1850, 0.0625
    %v2012 = vmul.f32 %v1855, 0.0625
    %v2013 = vmul.f32 %v1860, 0.0625
    %v2014 = vmul.f32 %v1865, 0.0625
    %v2015 = vmul.f32 %v1870, 0.0625
    %v2016 = vmul.f32 %v1875, 0.0625
    %v2017 = vmul.f32 %v1880, 0.0625
    %v2018 = vmul.f32 %v1885, 0.0625
    %v2019 = vmul.f32 %v1890, 0.0625
    %v2020 = vmul.f32 %v1895, 0.0625
    %v2021 = vmul.f32 %v1900, 0.0625
    %v2022 = vmul.f32 %v1905, 0.0625
    %v2023 = vmul.f32 %v1910, 0.0625
    %v2024 = vmul.f32 %v1915, 0.0625
    %v2025 = vmul.f32 %v1920, 0.0625
    %v2026 = vmul.f32 %v1925, 0.0625
    %v2027 = vmul.f32 %v1930, 0.0625
    %v2028 = vmul.f32 %v1935, 0.0625
    %v2029 = vmul.f32 %v1940, 0.0625
    %v2030 = vmul.f32 %v1945, 0.0625
    %v2031 = vmul.f32 %v1950, 0.0625
    %v2032 = vmul.f32 %v1955, 0.0625
    %v2033 = vmul.f32 %v1960, 0.0625
    %v2034 = vmul.f32 %v1965, 0.0625
    %v2035 = vmul.f32 %v1970, 0.0625
    %v2036 = vmul.f32 %v1975, 0.0625
    %v2037 = vmul.f32 %v1980, 0.0625
    %v2038 = vmul.f32 %v1985, 0.0625
    %v2039 = vmul.f32 %v1990, 0.0625
    %v2040 = vmul.f32 %v1995, 0.0625
    %v2041 = vsub.f32 %v1527, %v1998
    %v2042 = vsub.f32 %v1530, %v1999
    %v2043 = vsub.f32 %v1535, %v2000
    %v2044 = vsub.f32 %v1538, %v2001
    %v2045 = vsub.f32 %v1543, %v2002
    %v2046 = vsub.f32 %v1546, %v2003
    %v2047 = vsub.f32 %v1551, %v2004
    %v2048 = vsub.f32 %v1554, %v2005
    %v2049 = vsub.f32 %v1559, %v2006
    %v2050 = vsub.f32 %v1562, %v2007
    %v2051 = vsub.f32 %v1567, %v2008
    %v2052 = vsub.f32 %v1570, %v2009
    %v2053 = vsub.f32 %v1575, %v2010
    %v2054 = vsub.f32 %v1578, %v2011
    %v2055 = vsub.f32 %v1583, %v2012
    %v2056 = vsub.f32 %v1586, %v2013
    %v2057 = vsub.f32 %v1591, %v2014
    %v2058 = vsub.f32 %v1594, %v2015
    %v2059 = vsub.f32 %v1599, %v2016
    %v2060 = vsub.f32 %v1602, %v2017
    %v2061 = vsub.f32 %v1607, %v2018
    %v2062 = vsub.f32 %v1610, %v2019
    %v2063 = vsub.f32 %v1615, %v2020
    %v2064 = vsub.f32 %v1618, %v2021
    %v2065 = vsub.f32 %v1623, %v2022
    %v2066 = vsub.f32 %v1626, %v2023
    %v2067 = vsub.f32 %v1631, %v2024
    %v2068 = vsub.f32 %v1634, %v2025
    %v2069 = vsub.f32 %v1639, %v2026
    %v2070 = vsub.f32 %v1642, %v2027
    %v2071 = vsub.f32 %v1647, %v2028
    %v2072 = vsub.f32 %v1650, %v2029
    %v2073 = vsub.f32 %v1655, %v2030
    %v2074 = vsub.f32 %v1658, %v2031
    %v2075 = vsub.f32 %v1663, %v2032
    %v2076 = vsub.f32 %v1666, %v2033
    %v2077 = vsub.f32 %v1671, %v2034
    %v2078 = vsub.f32 %v1674, %v2035
    %v2079 = vsub.f32 %v1679, %v2036
    %v2080 = vsub.f32 %v1682, %v2037
    %v2081 = vsub.f32 %v1687, %v2038
    %v2082 = vsub.f32 %v1690, %v2039
    %v2083 = vsub.f32 %v1695, %v2040
    %v2084 = vmul.f32 %v2041, %v2041
    %v2085 = vmul.f32 %v2042, %v2042
    %v2086 = vmul.f32 %v2043, %v2043
    %v2087 = vmul.f32 %v2044, %v2044
    %v2088 = vmul.f32 %v2045, %v2045
    %v2089 = vmul.f32 %v2046, %v2046
    %v2090 = vmul.f32 %v2047, %v2047
    %v2091 = vmul.f32 %v2048, %v2048
    %v2092 = vmul.f32 %v2049, %v2049
    %v2093 = vmul.f32 %v2050, %v2050
    %v2094 = vmul.f32 %v2051, %v2051
    %v2095 = vmul.f32 %v2052, %v2052
    %v2096 = vmul.f32 %v2053, %v2053
    %v2097 = vmul.f32 %v2054, %v2054
    %v2098 = vmul.f32 %v2055, %v2055
    %v2099 = vmul.f32 %v2056, %v2056
    %v2100 = vmul.f32 %v2057, %v2057
    %v2101 = vmul.f32 %v2058, %v2058
    %v2102 = vmul.f32 %v2059, %v2059
    %v2103 = vmul.f32 %v2060, %v2060
    %v2104 = vmul.f32 %v2061, %v2061
    %v2105 = vmul.f32 %v2062, %v2062
    %v2106 = vmul.f32 %v2063, %v2063
    %v2107 = vmul.f32 %v2064, %v2064
    %v2108 = vmul.f32 %v2065, %v2065
    %v2109 = vmul.f32 %v2066, %v2066
    %v2110 = vmul.f32 %v2067, %v2067
    %v2111 = vmul.f32 %v2068, %v2068
    %v2112 = vmul.f32 %v2069, %v2069
    %v2113 = vmul.f32 %v2070, %v2070
    %v2114 = vmul.f32 %v2071, %v2071
    %v2115 = vmul.f32 %v2072, %v2072
    %v2116 = vmul.f32 %v2073, %v2073
    %v2117 = vmul.f32 %v2074, %v2074
    %v2118 = vmul.f32 %v2075, %v2075
    %v2119 = vmul.f32 %v2076, %v2076
    %v2120 = vmul.f32 %v2077, %v2077
    %v2121 = vmul.f32 %v2078, %v2078
    %v2122 = vmul.f32 %v2079, %v2079
    %v2123 = vmul.f32 %v2080, %v2080
    %v2124 = vmul.f32 %v2081, %v2081
    %v2125 = vmul.f32 %v2082, %v2082
    %v2126 = vmul.f32 %v2083, %v2083
    %2127 = vmatprep.subr.mxu0 0.0
    %2128 = vmatpush1.msra.mxu0 %v1700
    %2129 = vmatprep.subr.mxu0 0.0
    %2130 = vmatpush1.msra.mxu0 %v1701
    %2131 = vmatprep.subr.mxu0 0.0
    %2132 = vmatpush1.msra.mxu0 %v1702
    %2133 = vmatprep.subr.mxu0 0.0
    %2134 = vmatpush1.msra.mxu0 %v1703
    %2135 = vmatprep.subr.mxu0 0.0
    %2136 = vmatpush1.msra.mxu0 %v1704
    %2137 = vmatprep.subr.mxu0 0.0
    %2138 = vmatpush1.msra.mxu0 %v1705
    %2139 = vmatprep.subr.mxu0 0.0
    %2140 = vmatpush1.msra.mxu0 %v1706
    %2141 = vmatprep.subr.mxu0 0.0
    %2142 = vmatpush1.msra.mxu0 %v1707
    %2143 = vmatprep.subr.mxu0 0.0
    %2144 = vmatpush1.msra.mxu0 %v1708
    %2145 = vmatprep.subr.mxu0 0.0
    %2146 = vmatpush1.msra.mxu0 %v1709
    %2147 = vmatprep.subr.mxu0 0.0
    %2148 = vmatpush1.msra.mxu0 %v1710
    %2149 = vmatprep.subr.mxu0 0.0
    %2150 = vmatpush1.msra.mxu0 %v1711
    %2151 = vmatprep.subr.mxu0 0.0
    %2152 = vmatpush1.msra.mxu0 %v1712
    %2153 = vmatprep.subr.mxu0 0.0
    %2154 = vmatpush1.msra.mxu0 %v1713
    %2155 = vmatprep.subr.mxu0 0.0
    %2156 = vmatpush1.msra.mxu0 %v1714
    %2157 = vmatprep.subr.mxu0 0.0
    %2158 = vmatpush1.msra.mxu0 %v1715
    %2159 = vmatprep.subr.mxu0 0.0
    %2160 = vmatpush1.msra.mxu0 0.0
    %2161 = vmatprep.subr.mxu0 0.0
    %2162 = vmatpush1.msra.mxu0 0.0
    %2163 = vmatprep.subr.mxu0 0.0
    %2164 = vmatpush1.msra.mxu0 0.0
    %2165 = vmatprep.subr.mxu0 0.0
    %2166 = vmatpush1.msra.mxu0 0.0
    %2167 = vmatprep.subr.mxu0 0.0
    %2168 = vmatpush1.msra.mxu0 0.0
    %2169 = vmatprep.subr.mxu0 0.0
    %2170 = vmatpush1.msra.mxu0 0.0
    %2171 = vmatprep.subr.mxu0 0.0
    %2172 = vmatpush1.msra.mxu0 0.0
    %2173 = vmatprep.subr.mxu0 0.0
    %2174 = vmatpush1.msra.mxu0 0.0
    %2175 = vmatprep.subr.mxu0 0.0
    %2176 = vmatpush1.msra.mxu0 0.0
    %2177 = vmatprep.subr.mxu0 0.0
    %2178 = vmatpush1.msra.mxu0 0.0
    %2179 = vmatprep.subr.mxu0 0.0
    %2180 = vmatpush1.msra.mxu0 0.0
    %2181 = vmatprep.subr.mxu0 0.0
    %2182 = vmatpush1.msra.mxu0 0.0
    %2183 = vmatprep.subr.mxu0 0.0
    %2184 = vmatpush1.msra.mxu0 0.0
    %2185 = vmatprep.subr.mxu0 0.0
    %2186 = vmatpush1.msra.mxu0 0.0
    %2187 = vmatprep.subr.mxu0 0.0
    %2188 = vmatpush1.msra.mxu0 0.0
    %2189 = vmatprep.subr.mxu0 0.0
    %2190 = vmatpush1.msra.mxu0 0.0
    %2191 = vmatprep.mubr.f32.mxu0 0.0
    %2192 = vmatmul.mubr.f32.gmra.mrb[0].mxu0 %v2084
    %v2193 = vpop.f32.mrb[0].mxu0
    %v2194 = vadd.f32 0.0, %v2193
    %v2195 = vpop.f32.mrb[0].mxu0
    %2196 = vmatprep.mubr.f32.mxu0 0.0
    %2197 = vmatmul.mubr.f32.gmra.mrb[0].mxu0 %v2085
    %v2198 = vpop.f32.mrb[0].mxu0
    %v2199 = vadd.f32 0.0, %v2198
    %v2200 = vpop.f32.mrb[0].mxu0
    %2201 = vmatprep.mubr.f32.mxu0 0.0
    %2202 = vmatmul.mubr.f32.gmra.mrb[0].mxu0 %v2086
    %v2203 = vpop.f32.mrb[0].mxu0
    %v2204 = vadd.f32 0.0, %v2203
    %v2205 = vpop.f32.mrb[0].mxu0
    %2206 = vmatprep.mubr.f32.mxu0 0.0
    %2207 = vmatmul.mubr.f32.gmra.mrb[0].mxu0 %v2087
    %v2208 = vpop.f32.mrb[0].mxu0
    %v2209 = vadd.f32 0.0, %v2208
    %v2210 = vpop.f32.mrb[0].mxu0
    %2211 = vmatprep.mubr.f32.mxu0 0.0
    %2212 = vmatmul.mubr.f32.gmra.mrb[0].mxu0 %v2088
    %v2213 = vpop.f32.mrb[0].mxu0
    %v2214 = vadd.f32 0.0, %v2213
    %v2215 = vpop.f32.mrb[0].mxu0
    %2216 = vmatprep.mubr.f32.mxu0 0.0
    %2217 = vmatmul.mubr.f32.gmra.mrb[0].mxu0 %v2089
    %v2218 = vpop.f32.mrb[0].mxu0
    %v2219 = vadd.f32 0.0, %v2218
    %v2220 = vpop.f32.mrb[0].mxu0
    %2221 = vmatprep.mubr.f32.mxu0 0.0
    %2222 = vmatmul.mubr.f32.gmra.mrb[0].mxu0 %v2090
    %v2223 = vpop.f32.mrb[0].mxu0
    %v2224 = vadd.f32 0.0, %v2223
    %v2225 = vpop.f32.mrb[0].mxu0
    %2226 = vmatprep.mubr.f32.mxu0 0.0
    %2227 = vmatmul.mubr.f32.gmra.mrb[0].mxu0 %v2091
    %v2228 = vpop.f32.mrb[0].mxu0
    %v2229 = vadd.f32 0.0, %v2228
    %v2230 = vpop.f32.mrb[0].mxu0
    %2231 = vmatprep.mubr.f32.mxu0 0.0
    %2232 = vmatmul.mubr.f32.gmra.mrb[0].mxu0 %v2092
    %v2233 = vpop.f32.mrb[0].mxu0
    %v2234 = vadd.f32 0.0, %v2233
    %v2235 = vpop.f32.mrb[0].mxu0
    %2236 = vmatprep.mubr.f32.mxu0 0.0
    %2237 = vmatmul.mubr.f32.gmra.mrb[0].mxu0 %v2093
    %v2238 = vpop.f32.mrb[0].mxu0
    %v2239 = vadd.f32 0.0, %v2238
    %v2240 = vpop.f32.mrb[0].mxu0
    %2241 = vmatprep.mubr.f32.mxu0 0.0
    %2242 = vmatmul.mubr.f32.gmra.mrb[0].mxu0 %v2094
    %v2243 = vpop.f32.mrb[0].mxu0
    %v2244 = vadd.f32 0.0, %v2243
    %v2245 = vpop.f32.mrb[0].mxu0
    %2246 = vmatprep.mubr.f32.mxu0 0.0
    %2247 = vmatmul.mubr.f32.gmra.mrb[0].mxu0 %v2095
    %v2248 = vpop.f32.mrb[0].mxu0
    %v2249 = vadd.f32 0.0, %v2248
    %v2250 = vpop.f32.mrb[0].mxu0
    %2251 = vmatprep.mubr.f32.mxu0 0.0
    %2252 = vmatmul.mubr.f32.gmra.mrb[0].mxu0 %v2096
    %v2253 = vpop.f32.mrb[0].mxu0
    %v2254 = vadd.f32 0.0, %v2253
    %v2255 = vpop.f32.mrb[0].mxu0
    %2256 = vmatprep.mubr.f32.mxu0 0.0
    %2257 = vmatmul.mubr.f32.gmra.mrb[0].mxu0 %v2097
    %v2258 = vpop.f32.mrb[0].mxu0
    %v2259 = vadd.f32 0.0, %v2258
    %v2260 = vpop.f32.mrb[0].mxu0
    %2261 = vmatprep.mubr.f32.mxu0 0.0
    %2262 = vmatmul.mubr.f32.gmra.mrb[0].mxu0 %v2098
    %v2263 = vpop.f32.mrb[0].mxu0
    %v2264 = vadd.f32 0.0, %v2263
    %v2265 = vpop.f32.mrb[0].mxu0
    %2266 = vmatprep.mubr.f32.mxu0 0.0
    %2267 = vmatmul.mubr.f32.gmra.mrb[0].mxu0 %v2099
    %v2268 = vpop.f32.mrb[0].mxu0
    %v2269 = vadd.f32 0.0, %v2268
    %v2270 = vpop.f32.mrb[0].mxu0
    %2271 = vmatprep.mubr.f32.mxu0 0.0
    %2272 = vmatmul.mubr.f32.gmra.mrb[0].mxu0 %v2100
    %v2273 = vpop.f32.mrb[0].mxu0
    %v2274 = vadd.f32 0.0, %v2273
    %v2275 = vpop.f32.mrb[0].mxu0
    %2276 = vmatprep.mubr.f32.mxu0 0.0
    %2277 = vmatmul.mubr.f32.gmra.mrb[0].mxu0 %v2101
    %v2278 = vpop.f32.mrb[0].mxu0
    %v2279 = vadd.f32 0.0, %v2278
    %v2280 = vpop.f32.mrb[0].mxu0
    %2281 = vmatprep.mubr.f32.mxu0 0.0
    %2282 = vmatmul.mubr.f32.gmra.mrb[0].mxu0 %v2102
    %v2283 = vpop.f32.mrb[0].mxu0
    %v2284 = vadd.f32 0.0, %v2283
    %v2285 = vpop.f32.mrb[0].mxu0
    %2286 = vmatprep.mubr.f32.mxu0 0.0
    %2287 = vmatmul.mubr.f32.gmra.mrb[0].mxu0 %v2103
    %v2288 = vpop.f32.mrb[0].mxu0
    %v2289 = vadd.f32 0.0, %v2288
    %v2290 = vpop.f32.mrb[0].mxu0
    %2291 = vmatprep.mubr.f32.mxu0 0.0
    %2292 = vmatmul.mubr.f32.gmra.mrb[0].mxu0 %v2104
    %v2293 = vpop.f32.mrb[0].mxu0
    %v2294 = vadd.f32 0.0, %v2293
    %v2295 = vpop.f32.mrb[0].mxu0
    %2296 = vmatprep.mubr.f32.mxu0 0.0
    %2297 = vmatmul.mubr.f32.gmra.mrb[0].mxu0 %v2105
    %v2298 = vpop.f32.mrb[0].mxu0
    %v2299 = vadd.f32 0.0, %v2298
    %v2300 = vpop.f32.mrb[0].mxu0
    %2301 = vmatprep.mubr.f32.mxu0 0.0
    %2302 = vmatmul.mubr.f32.gmra.mrb[0].mxu0 %v2106
    %v2303 = vpop.f32.mrb[0].mxu0
    %v2304 = vadd.f32 0.0, %v2303
    %v2305 = vpop.f32.mrb[0].mxu0
    %2306 = vmatprep.mubr.f32.mxu0 0.0
    %2307 = vmatmul.mubr.f32.gmra.mrb[0].mxu0 %v2107
    %v2308 = vpop.f32.mrb[0].mxu0
    %v2309 = vadd.f32 0.0, %v2308
    %v2310 = vpop.f32.mrb[0].mxu0
    %2311 = vmatprep.mubr.f32.mxu0 0.0
    %2312 = vmatmul.mubr.f32.gmra.mrb[0].mxu0 %v2108
    %v2313 = vpop.f32.mrb[0].mxu0
    %v2314 = vadd.f32 0.0, %v2313
    %v2315 = vpop.f32.mrb[0].mxu0
    %2316 = vmatprep.mubr.f32.mxu0 0.0
    %2317 = vmatmul.mubr.f32.gmra.mrb[0].mxu0 %v2109
    %v2318 = vpop.f32.mrb[0].mxu0
    %v2319 = vadd.f32 0.0, %v2318
    %v2320 = vpop.f32.mrb[0].mxu0
    %2321 = vmatprep.mubr.f32.mxu0 0.0
    %2322 = vmatmul.mubr.f32.gmra.mrb[0].mxu0 %v2110
    %v2323 = vpop.f32.mrb[0].mxu0
    %v2324 = vadd.f32 0.0, %v2323
    %v2325 = vpop.f32.mrb[0].mxu0
    %2326 = vmatprep.mubr.f32.mxu0 0.0
    %2327 = vmatmul.mubr.f32.gmra.mrb[0].mxu0 %v2111
    %v2328 = vpop.f32.mrb[0].mxu0
    %v2329 = vadd.f32 0.0, %v2328
    %v2330 = vpop.f32.mrb[0].mxu0
    %2331 = vmatprep.mubr.f32.mxu0 0.0
    %2332 = vmatmul.mubr.f32.gmra.mrb[0].mxu0 %v2112
    %v2333 = vpop.f32.mrb[0].mxu0
    %v2334 = vadd.f32 0.0, %v2333
    %v2335 = vpop.f32.mrb[0].mxu0
    %2336 = vmatprep.mubr.f32.mxu0 0.0
    %2337 = vmatmul.mubr.f32.gmra.mrb[0].mxu0 %v2113
    %v2338 = vpop.f32.mrb[0].mxu0
    %v2339 = vadd.f32 0.0, %v2338
    %v2340 = vpop.f32.mrb[0].mxu0
    %2341 = vmatprep.mubr.f32.mxu0 0.0
    %2342 = vmatmul.mubr.f32.gmra.mrb[0].mxu0 %v2114
    %v2343 = vpop.f32.mrb[0].mxu0
    %v2344 = vadd.f32 0.0, %v2343
    %v2345 = vpop.f32.mrb[0].mxu0
    %2346 = vmatprep.mubr.f32.mxu0 0.0
    %2347 = vmatmul.mubr.f32.gmra.mrb[0].mxu0 %v2115
    %v2348 = vpop.f32.mrb[0].mxu0
    %v2349 = vadd.f32 0.0, %v2348
    %v2350 = vpop.f32.mrb[0].mxu0
    %2351 = vmatprep.mubr.f32.mxu0 0.0
    %2352 = vmatmul.mubr.f32.gmra.mrb[0].mxu0 %v2116
    %v2353 = vpop.f32.mrb[0].mxu0
    %v2354 = vadd.f32 0.0, %v2353
    %v2355 = vpop.f32.mrb[0].mxu0
    %2356 = vmatprep.mubr.f32.mxu0 0.0
    %2357 = vmatmul.mubr.f32.gmra.mrb[0].mxu0 %v2117
    %v2358 = vpop.f32.mrb[0].mxu0
    %v2359 = vadd.f32 0.0, %v2358
    %v2360 = vpop.f32.mrb[0].mxu0
    %2361 = vmatprep.mubr.f32.mxu0 0.0
    %2362 = vmatmul.mubr.f32.gmra.mrb[0].mxu0 %v2118
    %v2363 = vpop.f32.mrb[0].mxu0
    %v2364 = vadd.f32 0.0, %v2363
    %v2365 = vpop.f32.mrb[0].mxu0
    %2366 = vmatprep.mubr.f32.mxu0 0.0
    %2367 = vmatmul.mubr.f32.gmra.mrb[0].mxu0 %v2119
    %v2368 = vpop.f32.mrb[0].mxu0
    %v2369 = vadd.f32 0.0, %v2368
    %v2370 = vpop.f32.mrb[0].mxu0
    %2371 = vmatprep.mubr.f32.mxu0 0.0
    %2372 = vmatmul.mubr.f32.gmra.mrb[0].mxu0 %v2120
    %v2373 = vpop.f32.mrb[0].mxu0
    %v2374 = vadd.f32 0.0, %v2373
    %v2375 = vpop.f32.mrb[0].mxu0
    %2376 = vmatprep.mubr.f32.mxu0 0.0
    %2377 = vmatmul.mubr.f32.gmra.mrb[0].mxu0 %v2121
    %v2378 = vpop.f32.mrb[0].mxu0
    %v2379 = vadd.f32 0.0, %v2378
    %v2380 = vpop.f32.mrb[0].mxu0
    %2381 = vmatprep.mubr.f32.mxu0 0.0
    %2382 = vmatmul.mubr.f32.gmra.mrb[0].mxu0 %v2122
    %v2383 = vpop.f32.mrb[0].mxu0
    %v2384 = vadd.f32 0.0, %v2383
    %v2385 = vpop.f32.mrb[0].mxu0
    %2386 = vmatprep.mubr.f32.mxu0 0.0
    %2387 = vmatmul.mubr.f32.gmra.mrb[0].mxu0 %v2123
    %v2388 = vpop.f32.mrb[0].mxu0
    %v2389 = vadd.f32 0.0, %v2388
    %v2390 = vpop.f32.mrb[0].mxu0
    %2391 = vmatprep.mubr.f32.mxu0 0.0
    %2392 = vmatmul.mubr.f32.gmra.mrb[0].mxu0 %v2124
    %v2393 = vpop.f32.mrb[0].mxu0
    %v2394 = vadd.f32 0.0, %v2393
    %v2395 = vpop.f32.mrb[0].mxu0
    %2396 = vmatprep.mubr.f32.mxu0 0.0
    %2397 = vmatmul.mubr.f32.gmra.mrb[0].mxu0 %v2125
    %v2398 = vpop.f32.mrb[0].mxu0
    %v2399 = vadd.f32 0.0, %v2398
    %v2400 = vpop.f32.mrb[0].mxu0
    %2401 = vmatprep.mubr.f32.mxu0 0.0
    %2402 = vmatmul.mubr.f32.gmra.mrb[0].mxu0 %v2126
    %v2403 = vpop.f32.mrb[0].mxu0
    %v2404 = vadd.f32 0.0, %v2403
    %v2405 = vpop.f32.mrb[0].mxu0
    %2406 = vdwg.mxu0
    %v2407 = vmul.f32 %v2194, 0.0625
    %v2408 = vmul.f32 %v2199, 0.0625
    %v2409 = vmul.f32 %v2204, 0.0625
    %v2410 = vmul.f32 %v2209, 0.0625
    %v2411 = vmul.f32 %v2214, 0.0625
    %v2412 = vmul.f32 %v2219, 0.0625
    %v2413 = vmul.f32 %v2224, 0.0625
    %v2414 = vmul.f32 %v2229, 0.0625
    %v2415 = vmul.f32 %v2234, 0.0625
    %v2416 = vmul.f32 %v2239, 0.0625
    %v2417 = vmul.f32 %v2244, 0.0625
    %v2418 = vmul.f32 %v2249, 0.0625
    %v2419 = vmul.f32 %v2254, 0.0625
    %v2420 = vmul.f32 %v2259, 0.0625
    %v2421 = vmul.f32 %v2264, 0.0625
    %v2422 = vmul.f32 %v2269, 0.0625
    %v2423 = vmul.f32 %v2274, 0.0625
    %v2424 = vmul.f32 %v2279, 0.0625
    %v2425 = vmul.f32 %v2284, 0.0625
    %v2426 = vmul.f32 %v2289, 0.0625
    %v2427 = vmul.f32 %v2294, 0.0625
    %v2428 = vmul.f32 %v2299, 0.0625
    %v2429 = vmul.f32 %v2304, 0.0625
    %v2430 = vmul.f32 %v2309, 0.0625
    %v2431 = vmul.f32 %v2314, 0.0625
    %v2432 = vmul.f32 %v2319, 0.0625
    %v2433 = vmul.f32 %v2324, 0.0625
    %v2434 = vmul.f32 %v2329, 0.0625
    %v2435 = vmul.f32 %v2334, 0.0625
    %v2436 = vmul.f32 %v2339, 0.0625
    %v2437 = vmul.f32 %v2344, 0.0625
    %v2438 = vmul.f32 %v2349, 0.0625
    %v2439 = vmul.f32 %v2354, 0.0625
    %v2440 = vmul.f32 %v2359, 0.0625
    %v2441 = vmul.f32 %v2364, 0.0625
    %v2442 = vmul.f32 %v2369, 0.0625
    %v2443 = vmul.f32 %v2374, 0.0625
    %v2444 = vmul.f32 %v2379, 0.0625
    %v2445 = vmul.f32 %v2384, 0.0625
    %v2446 = vmul.f32 %v2389, 0.0625
    %v2447 = vmul.f32 %v2394, 0.0625
    %v2448 = vmul.f32 %v2399, 0.0625
    %v2449 = vmul.f32 %v2404, 0.0625
    %v2450 = vadd.f32 %v2407, 1e-05
    %v2451 = vadd.f32 %v2408, 1e-05
    %v2452 = vadd.f32 %v2409, 1e-05
    %v2453 = vadd.f32 %v2410, 1e-05
    %v2454 = vadd.f32 %v2411, 1e-05
    %v2455 = vadd.f32 %v2412, 1e-05
    %v2456 = vadd.f32 %v2413, 1e-05
    %v2457 = vadd.f32 %v2414, 1e-05
    %v2458 = vadd.f32 %v2415, 1e-05
    %v2459 = vadd.f32 %v2416, 1e-05
    %v2460 = vadd.f32 %v2417, 1e-05
    %v2461 = vadd.f32 %v2418, 1e-05
    %v2462 = vadd.f32 %v2419, 1e-05
    %v2463 = vadd.f32 %v2420, 1e-05
    %v2464 = vadd.f32 %v2421, 1e-05
    %v2465 = vadd.f32 %v2422, 1e-05
    %v2466 = vadd.f32 %v2423, 1e-05
    %v2467 = vadd.f32 %v2424, 1e-05
    %v2468 = vadd.f32 %v2425, 1e-05
    %v2469 = vadd.f32 %v2426, 1e-05
    %v2470 = vadd.f32 %v2427, 1e-05
    %v2471 = vadd.f32 %v2428, 1e-05
    %v2472 = vadd.f32 %v2429, 1e-05
    %v2473 = vadd.f32 %v2430, 1e-05
    %v2474 = vadd.f32 %v2431, 1e-05
    %v2475 = vadd.f32 %v2432, 1e-05
    %v2476 = vadd.f32 %v2433, 1e-05
    %v2477 = vadd.f32 %v2434, 1e-05
    %v2478 = vadd.f32 %v2435, 1e-05
    %v2479 = vadd.f32 %v2436, 1e-05
    %v2480 = vadd.f32 %v2437, 1e-05
    %v2481 = vadd.f32 %v2438, 1e-05
    %v2482 = vadd.f32 %v2439, 1e-05
    %v2483 = vadd.f32 %v2440, 1e-05
    %v2484 = vadd.f32 %v2441, 1e-05
    %v2485 = vadd.f32 %v2442, 1e-05
    %v2486 = vadd.f32 %v2443, 1e-05
    %v2487 = vadd.f32 %v2444, 1e-05
    %v2488 = vadd.f32 %v2445, 1e-05
    %v2489 = vadd.f32 %v2446, 1e-05
    %v2490 = vadd.f32 %v2447, 1e-05
    %v2491 = vadd.f32 %v2448, 1e-05
    %v2492 = vadd.f32 %v2449, 1e-05
    %v2493 = vrsqrt.pop %v2450
    %v2494 = vrsqrt.pop %v2451
    %v2495 = vrsqrt.pop %v2452
    %v2496 = vrsqrt.pop %v2453
    %v2497 = vrsqrt.pop %v2454
    %v2498 = vrsqrt.pop %v2455
    %v2499 = vrsqrt.pop %v2456
    %v2500 = vrsqrt.pop %v2457
    %v2501 = vrsqrt.pop %v2458
    %v2502 = vrsqrt.pop %v2459
    %v2503 = vrsqrt.pop %v2460
    %v2504 = vrsqrt.pop %v2461
    %v2505 = vrsqrt.pop %v2462
    %v2506 = vrsqrt.pop %v2463
    %v2507 = vrsqrt.pop %v2464
    %v2508 = vrsqrt.pop %v2465
    %v2509 = vrsqrt.pop %v2466
    %v2510 = vrsqrt.pop %v2467
    %v2511 = vrsqrt.pop %v2468
    %v2512 = vrsqrt.pop %v2469
    %v2513 = vrsqrt.pop %v2470
    %v2514 = vrsqrt.pop %v2471
    %v2515 = vrsqrt.pop %v2472
    %v2516 = vrsqrt.pop %v2473
    %v2517 = vrsqrt.pop %v2474
    %v2518 = vrsqrt.pop %v2475
    %v2519 = vrsqrt.pop %v2476
    %v2520 = vrsqrt.pop %v2477
    %v2521 = vrsqrt.pop %v2478
    %v2522 = vrsqrt.pop %v2479
    %v2523 = vrsqrt.pop %v2480
    %v2524 = vrsqrt.pop %v2481
    %v2525 = vrsqrt.pop %v2482
    %v2526 = vrsqrt.pop %v2483
    %v2527 = vrsqrt.pop %v2484
    %v2528 = vrsqrt.pop %v2485
    %v2529 = vrsqrt.pop %v2486
    %v2530 = vrsqrt.pop %v2487
    %v2531 = vrsqrt.pop %v2488
    %v2532 = vrsqrt.pop %v2489
    %v2533 = vrsqrt.pop %v2490
    %v2534 = vrsqrt.pop %v2491
    %v2535 = vrsqrt.pop %v2492
    %v2536 = vmul.f32 %v2041, %v2493
    %v2537 = vmul.f32 %v2042, %v2494
    %v2538 = vmul.f32 %v2043, %v2495
    %v2539 = vmul.f32 %v2044, %v2496
    %v2540 = vmul.f32 %v2045, %v2497
    %v2541 = vmul.f32 %v2046, %v2498
    %v2542 = vmul.f32 %v2047, %v2499
    %v2543 = vmul.f32 %v2048, %v2500
    %v2544 = vmul.f32 %v2049, %v2501
    %v2545 = vmul.f32 %v2050, %v2502
    %v2546 = vmul.f32 %v2051, %v2503
    %v2547 = vmul.f32 %v2052, %v2504
    %v2548 = vmul.f32 %v2053, %v2505
    %v2549 = vmul.f32 %v2054, %v2506
    %v2550 = vmul.f32 %v2055, %v2507
    %v2551 = vmul.f32 %v2056, %v2508
    %v2552 = vmul.f32 %v2057, %v2509
    %v2553 = vmul.f32 %v2058, %v2510
    %v2554 = vmul.f32 %v2059, %v2511
    %v2555 = vmul.f32 %v2060, %v2512
    %v2556 = vmul.f32 %v2061, %v2513
    %v2557 = vmul.f32 %v2062, %v2514
    %v2558 = vmul.f32 %v2063, %v2515
    %v2559 = vmul.f32 %v2064, %v2516
    %v2560 = vmul.f32 %v2065, %v2517
    %v2561 = vmul.f32 %v2066, %v2518
    %v2562 = vmul.f32 %v2067, %v2519
    %v2563 = vmul.f32 %v2068, %v2520
    %v2564 = vmul.f32 %v2069, %v2521
    %v2565 = vmul.f32 %v2070, %v2522
    %v2566 = vmul.f32 %v2071, %v2523
    %v2567 = vmul.f32 %v2072, %v2524
    %v2568 = vmul.f32 %v2073, %v2525
    %v2569 = vmul.f32 %v2074, %v2526
    %v2570 = vmul.f32 %v2075, %v2527
    %v2571 = vmul.f32 %v2076, %v2528
    %v2572 = vmul.f32 %v2077, %v2529
    %v2573 = vmul.f32 %v2078, %v2530
    %v2574 = vmul.f32 %v2079, %v2531
    %v2575 = vmul.f32 %v2080, %v2532
    %v2576 = vmul.f32 %v2081, %v2533
    %v2577 = vmul.f32 %v2082, %v2534
    %v2578 = vmul.f32 %v2083, %v2535
    %v2580 = vlaneseq
    %v2581 = vshrl.u32 %v2580, 7
    %v2582 = vsub.s32 0, %v2581
    %v2583 = vrot.slane %v1716, %v2582
    %v2585 = vmul.f32 %v2536, %v2583
    %v2586 = vmul.f32 %v2537, %v2583
    %v2587 = vmul.f32 %v2538, %v2583
    %v2588 = vmul.f32 %v2539, %v2583
    %v2589 = vmul.f32 %v2540, %v2583
    %v2590 = vmul.f32 %v2541, %v2583
    %v2591 = vmul.f32 %v2542, %v2583
    %v2592 = vmul.f32 %v2543, %v2583
    %v2593 = vmul.f32 %v2544, %v2583
    %v2594 = vmul.f32 %v2545, %v2583
    %v2595 = vmul.f32 %v2546, %v2583
    %v2596 = vmul.f32 %v2547, %v2583
    %v2597 = vmul.f32 %v2548, %v2583
    %v2598 = vmul.f32 %v2549, %v2583
    %v2599 = vmul.f32 %v2550, %v2583
    %v2600 = vmul.f32 %v2551, %v2583
    %v2601 = vmul.f32 %v2552, %v2583
    %v2602 = vmul.f32 %v2553, %v2583
    %v2603 = vmul.f32 %v2554, %v2583
    %v2604 = vmul.f32 %v2555, %v2583
    %v2605 = vmul.f32 %v2556, %v2583
    %v2606 = vmul.f32 %v2557, %v2583
    %v2607 = vmul.f32 %v2558, %v2583
    %v2608 = vmul.f32 %v2559, %v2583
    %v2609 = vmul.f32 %v2560, %v2583
    %v2610 = vmul.f32 %v2561, %v2583
    %v2611 = vmul.f32 %v2562, %v2583
    %v2612 = vmul.f32 %v2563, %v2583
    %v2613 = vmul.f32 %v2564, %v2583
    %v2614 = vmul.f32 %v2565, %v2583
    %v2615 = vmul.f32 %v2566, %v2583
    %v2616 = vmul.f32 %v2567, %v2583
    %v2617 = vmul.f32 %v2568, %v2583
    %v2618 = vmul.f32 %v2569, %v2583
    %v2619 = vmul.f32 %v2570, %v2583
    %v2620 = vmul.f32 %v2571, %v2583
    %v2621 = vmul.f32 %v2572, %v2583
    %v2622 = vmul.f32 %v2573, %v2583
    %v2623 = vmul.f32 %v2574, %v2583
    %v2624 = vmul.f32 %v2575, %v2583
    %v2625 = vmul.f32 %v2576, %v2583
    %v2626 = vmul.f32 %v2577, %v2583
    %v2627 = vmul.f32 %v2578, %v2583
    %v2629 = vlaneseq
    %v2630 = vshrl.u32 %v2629, 7
    %v2631 = vsub.s32 0, %v2630
    %v2632 = vrot.slane %v1717, %v2631
    %v2634 = vadd.f32 %v2585, %v2632
    %v2635 = vadd.f32 %v2586, %v2632
    %v2636 = vadd.f32 %v2587, %v2632
    %v2637 = vadd.f32 %v2588, %v2632
    %v2638 = vadd.f32 %v2589, %v2632
    %v2639 = vadd.f32 %v2590, %v2632
    %v2640 = vadd.f32 %v2591, %v2632
    %v2641 = vadd.f32 %v2592, %v2632
    %v2642 = vadd.f32 %v2593, %v2632
    %v2643 = vadd.f32 %v2594, %v2632
    %v2644 = vadd.f32 %v2595, %v2632
    %v2645 = vadd.f32 %v2596, %v2632
    %v2646 = vadd.f32 %v2597, %v2632
    %v2647 = vadd.f32 %v2598, %v2632
    %v2648 = vadd.f32 %v2599, %v2632
    %v2649 = vadd.f32 %v2600, %v2632
    %v2650 = vadd.f32 %v2601, %v2632
    %v2651 = vadd.f32 %v2602, %v2632
    %v2652 = vadd.f32 %v2603, %v2632
    %v2653 = vadd.f32 %v2604, %v2632
    %v2654 = vadd.f32 %v2605, %v2632
    %v2655 = vadd.f32 %v2606, %v2632
    %v2656 = vadd.f32 %v2607, %v2632
    %v2657 = vadd.f32 %v2608, %v2632
    %v2658 = vadd.f32 %v2609, %v2632
    %v2659 = vadd.f32 %v2610, %v2632
    %v2660 = vadd.f32 %v2611, %v2632
    %v2661 = vadd.f32 %v2612, %v2632
    %v2662 = vadd.f32 %v2613, %v2632
    %v2663 = vadd.f32 %v2614, %v2632
    %v2664 = vadd.f32 %v2615, %v2632
    %v2665 = vadd.f32 %v2616, %v2632
    %v2666 = vadd.f32 %v2617, %v2632
    %v2667 = vadd.f32 %v2618, %v2632
    %v2668 = vadd.f32 %v2619, %v2632
    %v2669 = vadd.f32 %v2620, %v2632
    %v2670 = vadd.f32 %v2621, %v2632
    %v2671 = vadd.f32 %v2622, %v2632
    %v2672 = vadd.f32 %v2623, %v2632
    %v2673 = vadd.f32 %v2624, %v2632
    %v2674 = vadd.f32 %v2625, %v2632
    %v2675 = vadd.f32 %v2626, %v2632
    %v2676 = vadd.f32 %v2627, %v2632
    %2677 = vst [vmem:[#allocation8] sm:$0xff] %v2634
    %2678 = vst [vmem:[#allocation8 + $0x8] sm:$0xff] %v2635
    %2679 = vst [vmem:[#allocation8 + $0x10] sm:$0xff] %v2636
    %2680 = vst [vmem:[#allocation8 + $0x18] sm:$0xff] %v2637
    %2681 = vst [vmem:[#allocation8 + $0x20] sm:$0xff] %v2638
    %2682 = vst [vmem:[#allocation8 + $0x28] sm:$0xff] %v2639
    %2683 = vst [vmem:[#allocation8 + $0x30] sm:$0xff] %v2640
    %2684 = vst [vmem:[#allocation8 + $0x38] sm:$0xff] %v2641
    %2685 = vst [vmem:[#allocation8 + $0x40] sm:$0xff] %v2642
    %2686 = vst [vmem:[#allocation8 + $0x48] sm:$0xff] %v2643
    %2687 = vst [vmem:[#allocation8 + $0x50] sm:$0xff] %v2644
    %2688 = vst [vmem:[#allocation8 + $0x58] sm:$0xff] %v2645
    %2689 = vst [vmem:[#allocation8 + $0x60] sm:$0xff] %v2646
    %2690 = vst [vmem:[#allocation8 + $0x68] sm:$0xff] %v2647
    %2691 = vst [vmem:[#allocation8 + $0x70] sm:$0xff] %v2648
    %2692 = vst [vmem:[#allocation8 + $0x78] sm:$0xff] %v2649
    %2693 = vst [vmem:[#allocation8 + $0x80] sm:$0xff] %v2650
    %2694 = vst [vmem:[#allocation8 + $0x88] sm:$0xff] %v2651
    %2695 = vst [vmem:[#allocation8 + $0x90] sm:$0xff] %v2652
    %2696 = vst [vmem:[#allocation8 + $0x98] sm:$0xff] %v2653
    %2697 = vst [vmem:[#allocation8 + $0xa0] sm:$0xff] %v2654
    %2698 = vst [vmem:[#allocation8 + $0xa8] sm:$0xff] %v2655
    %2699 = vst [vmem:[#allocation8 + $0xb0] sm:$0xff] %v2656
    %2700 = vst [vmem:[#allocation8 + $0xb8] sm:$0xff] %v2657
    %2701 = vst [vmem:[#allocation8 + $0xc0] sm:$0xff] %v2658
    %2702 = vst [vmem:[#allocation8 + $0xc8] sm:$0xff] %v2659
    %2703 = vst [vmem:[#allocation8 + $0xd0] sm:$0xff] %v2660
    %2704 = vst [vmem:[#allocation8 + $0xd8] sm:$0xff] %v2661
    %2705 = vst [vmem:[#allocation8 + $0xe0] sm:$0xff] %v2662
    %2706 = vst [vmem:[#allocation8 + $0xe8] sm:$0xff] %v2663
    %2707 = vst [vmem:[#allocation8 + $0xf0] sm:$0xff] %v2664
    %2708 = vst [vmem:[#allocation8 + $0xf8] sm:$0xff] %v2665
    %2709 = vst [vmem:[#allocation8 + $0x100] sm:$0xff] %v2666
    %2710 = vst [vmem:[#allocation8 + $0x108] sm:$0xff] %v2667
    %2711 = vst [vmem:[#allocation8 + $0x110] sm:$0xff] %v2668
    %2712 = vst [vmem:[#allocation8 + $0x118] sm:$0xff] %v2669
    %2713 = vst [vmem:[#allocation8 + $0x120] sm:$0xff] %v2670
    %2714 = vst [vmem:[#allocation8 + $0x128] sm:$0xff] %v2671
    %2715 = vst [vmem:[#allocation8 + $0x130] sm:$0xff] %v2672
    %2716 = vst [vmem:[#allocation8 + $0x138] sm:$0xff] %v2673
    %2717 = vst [vmem:[#allocation8 + $0x140] sm:$0xff] %v2674
    %2718 = vst [vmem:[#allocation8 + $0x148] sm:$0xff] %v2675
    %2719 = vst [vmem:[#allocation8 + $0x150] sm:$0xff] %v2676
    // Predicated region
    $region34: #{tpu_custom_call.1} parent=1 // pred_check
      _
    $region35: #{tpu_custom_call.1} parent=1 // pred_check_branch
      %2721 = sbr.rel (0) target = $region37
    $region36: #{tpu_custom_call.1} parent=1 // pred_region
      %s2723 = ssub.s32 5504, 5504
      %2724 = vsyncadd [#allocation4], %s2723
      %s2725 = sshll.u32 [#allocation8], 4
      %s2726 = int_to_ptr.vmem [resolvable:$true] %s2725
      %2731 = dma.vmem_to_hbm [thread:$0]  %s2726, 5504, %s5, [#allocation4], 128, 128, 8
    $region37: #{tpu_custom_call.1} parent=1 // pred_fallthru
      _
    // Predicated region
    $region38: #{tpu_custom_call.1} parent=1 // pred_check
      _
    $region39: #{tpu_custom_call.1} parent=1 // pred_check_branch
      %2733 = sbr.rel (0) target = $region41
    $region40: #{tpu_custom_call.1} parent=1 // pred_region
      %2734 = dma.done [#allocation4], 5504
    $region41: #{tpu_custom_call.1} parent=1 // pred_fallthru
      _
    %2735 = vsyncpa [#allocation3], 1
    %2736 = vsyncpa [#allocation6], 1
    %2737 = vsyncpa [#allocation4], 1

</llo_original>
